<compile_context>
chip_gen: v7x
topology: tpu7x:2x2x1
jax: 0.10.0
libtpu: 0.0.40
codegen_flags: <defaults>
</compile_context>

<pallas_src>
import jax
import jax.numpy as jnp
from jax.experimental import pallas as pl
from jax.experimental.pallas import tpu as pltpu

_EPS = 1e-5  # nn.BatchNorm1d default eps


def _vmem_budget():
    """Generation-aware (vmem_limit_bytes, per-step edge-tile budget)."""
    cap = 64 * 1024 * 1024                      # conservative default (v7x per-TC)
    try:
        cap = int(pltpu.get_tpu_info().vmem_capacity_bytes)
    except Exception:
        pass
    vmem_limit = min(96 * 1024 * 1024, (cap * 3) // 4)       # 48 MB on v7x, 96 MB on v5e/v6e
    tile_budget = 16 * 1024 * 1024 if cap <= 64 * 1024 * 1024 else 40 * 1024 * 1024
    return vmem_limit, tile_budget


def _choose_row_tile(V, H, budget_bytes):
    """Largest row tile TI (multiple of 8 dividing V, or V itself) such that the
    edge working set (~8x the e tile: double-buffered in/out blocks + matmul &
    broadcast temporaries of kernel 2) stays within `budget_bytes` of VMEM."""
    lane_h = ((H + 127) // 128) * 128            # VMEM lane padding for H < 128
    per_row_bytes = V * lane_h * 4
    max_rows = max(1, budget_bytes // (per_row_bytes * 8))
    valid = sorted({d for d in range(8, V + 1, 8) if V % d == 0} | {V})
    fitting = [t for t in valid if t <= max_rows]
    return fitting[-1] if fitting else valid[0]


# ----------------------------------------------------------------------------
# Kernel 0: fused node projections  h @ [Wv|Wa|Wu|Wb] + b  -> hp_va, hp_ub
# ----------------------------------------------------------------------------
def _node_proj_kernel(h_ref, w_ref, b_ref, va_ref, ub_ref):
    H2 = va_ref.shape[2]                         # 2H
    hp = jnp.dot(h_ref[0].astype(w_ref.dtype), w_ref[...],
                 preferred_element_type=jnp.float32) + b_ref[0]
    va_ref[0] = hp[:, :H2]                       # [Vh | Ah]
    ub_ref[0] = hp[:, H2:]                       # [Uh | Bh]


# ----------------------------------------------------------------------------
# Kernel 1: row-tiled edge gating + gated sum-aggregation + partial BN moments
#           (e_pre stays VMEM-only: no HBM write)
# ----------------------------------------------------------------------------
def _edge_kernel(hpva_ref, hpub_ref, e_ref, wc_ref, bc_ref,
                 h_pre_ref, mom_h_ref, mom_e_ref):
    TI = h_pre_ref.shape[1]
    H = h_pre_ref.shape[2]
    V = hpva_ref.shape[1]

    hp_va = hpva_ref[0]                          # (V, 2H)  invariant over i
    Vh_all = hp_va[:, :H]                        # (V, H)   V*h_j for all j
    Ah_all = hp_va[:, H:]                        # (V, H)   A*h_j for all j
    hp_ub = hpub_ref[0]                          # (TI, 2H) rows of this i-tile
    Uh_t = hp_ub[:, :H]
    Bh_t = hp_ub[:, H:]

    # C*e for all edges of this row tile: one MXU matmul over TI*V rows.
    e_rows = e_ref[0]                            # (TI*V, H) f32
    Ce = jnp.dot(e_rows.astype(wc_ref.dtype), wc_ref[...],
                 preferred_element_type=jnp.float32) + bc_ref[0]

    # e_ij = A h_j + B h_i + C e_ij  (VMEM-only; recomputed in kernel 2)
    e_pre = Ce.reshape(TI, V, H) + Ah_all[None, :, :] + Bh_t[:, None, :]
    gates = jax.nn.sigmoid(e_pre)                            # EUP
    agg = jnp.sum(gates * Vh_all[None, :, :], axis=1)        # (TI, H), sum over j
    h_pre = Uh_t + agg
    h_pre_ref[0] = h_pre

    # Partial BatchNorm moments (sum, sum-of-squares) for this (batch, tile).
    mom_h_ref[0, 0] = jnp.concatenate(
        [jnp.sum(h_pre, axis=0, keepdims=True),
         jnp.sum(h_pre * h_pre, axis=0, keepdims=True)], axis=0)
    e_flat = e_pre.reshape(TI * V, H)
    mom_e_ref[0, 0] = jnp.concatenate(
        [jnp.sum(e_flat, axis=0, keepdims=True),
         jnp.sum(e_flat * e_flat, axis=0, keepdims=True)], axis=0)


# ----------------------------------------------------------------------------
# Kernel 2: recompute e_pre, batch-norm affine + ReLU + residual
# ----------------------------------------------------------------------------
def _finalize_kernel(h_in_ref, e_in_ref, h_pre_ref, hpva_ref, hpub_ref,
                     wc_ref, bc_ref, ss_h_ref, ss_e_ref,
                     h_out_ref, e_out_ref):
    TI = h_pre_ref.shape[1]
    H = h_pre_ref.shape[2]
    V = hpva_ref.shape[1]

    # Node path: BN affine + ReLU + residual.
    hn = h_pre_ref[0] * ss_h_ref[0] + ss_h_ref[1]
    h_out_ref[0] = h_in_ref[0] + jnp.maximum(hn, 0.0)

    # Edge path: recompute e_pre = C e + A h_j + B h_i (cheaper than a second
    # full HBM pass over a stored e_pre), then BN affine + ReLU + residual.
    e_rows = e_in_ref[0]                         # (TI*V, H) f32
    Ce = jnp.dot(e_rows.astype(wc_ref.dtype), wc_ref[...],
                 preferred_element_type=jnp.float32) + bc_ref[0]
    Ah_all = hpva_ref[0][:, H:]                  # (V, H)
    Bh_t = hpub_ref[0][:, H:]                    # (TI, H)
    e_pre = Ce.reshape(TI, V, H) + Ah_all[None, :, :] + Bh_t[:, None, :]
    en = e_pre * ss_e_ref[0] + ss_e_ref[1]       # (2,H) scale/shift broadcast
    e_out = e_rows.reshape(TI, V, H) + jnp.maximum(en, 0.0)
    e_out_ref[0] = e_out.reshape(TI * V, H)


# ----------------------------------------------------------------------------
# BatchNorm scale/shift from partial moments (tiny JAX reduction)
# ----------------------------------------------------------------------------
def _scale_shift(mom, count, gamma, beta):
    s = mom.sum(axis=(0, 1))                              # (2, H)
    mean = s[0] / count
    var = jnp.maximum(s[1] / count - mean * mean, 0.0)    # biased variance
    inv = jax.lax.rsqrt(var + _EPS)
    scale = gamma[0] * inv
    shift = beta[0] - mean * scale
    return jnp.stack([scale, shift], axis=0)              # (2, H)


# ----------------------------------------------------------------------------
# Wrapper
# ----------------------------------------------------------------------------
def gnn_layer_forward(h, e, graph, params, *, row_tile=None,
                      mxu_dtype="bfloat16"):
    """Dense GNNLayer forward (sum aggregation, batch norm, gated, residual).
    `graph` is only needed for 'mean' aggregation and is unused here.
    mxu_dtype: "bfloat16" (MXU operands bf16, f32 accumulation) or "float32"."""
    del graph
    B, V, H = h.shape
    assert e.shape == (B, V, V, H)

    f32 = jnp.float32
    # Aliasing/in-place e_out only truly holds when inputs are already f32;
    # astype below is a no-op in that case.
    h = h.astype(f32)
    e2 = e.astype(f32).reshape(B, V * V, H)      # contiguous -> free reshape

    vmem_limit, tile_budget = _vmem_budget()
    TI = row_tile if row_tile is not None else _choose_row_tile(V, H, tile_budget)
    assert V % TI == 0 and (TI % 8 == 0 or TI == V), "bad row tile"
    NI = V // TI

    mdt = jnp.bfloat16 if mxu_dtype == "bfloat16" else jnp.float32

    # Fused projection weights ordered [Wv | Wa | Wu | Wb] so the output splits
    # cleanly into hp_va = [Vh|Ah] (invariant stream) and hp_ub = [Uh|Bh].
    Wcat = jnp.concatenate(
        [params['Wv'], params['Wa'], params['Wu'], params['Wb']], axis=1).astype(mdt)
    bcat = jnp.concatenate(
        [params['bv'], params['ba'], params['bu'], params['bb']], axis=1).astype(f32)
    Wc = params['Wc'].astype(mdt)
    bc = params['bc'].astype(f32)

    cp = pltpu.CompilerParams(dimension_semantics=("parallel", "parallel"),
                              vmem_limit_bytes=vmem_limit)

    # ---- Kernel 0: fused node projections (row-tiled so both v7x TCs work) --
    hp_va, hp_ub = pl.pallas_call(
        _node_proj_kernel,
        out_shape=(jax.ShapeDtypeStruct((B, V, 2 * H), f32),
                   jax.ShapeDtypeStruct((B, V, 2 * H), f32)),
        grid=(B, NI),
        in_specs=[pl.BlockSpec((1, TI, H), lambda b, i: (b, i, 0)),
                  pl.BlockSpec((H, 4 * H), lambda b, i: (0, 0)),
                  pl.BlockSpec((1, 4 * H), lambda b, i: (0, 0))],
        out_specs=(pl.BlockSpec((1, TI, 2 * H), lambda b, i: (b, i, 0)),
                   pl.BlockSpec((1, TI, 2 * H), lambda b, i: (b, i, 0))),
        compiler_params=cp,
    )(h, Wcat, bcat)

    # ---- Kernel 1: edge gating + gated aggregation + partial BN moments -----
    h_pre, mom_h, mom_e = pl.pallas_call(
        _edge_kernel,
        out_shape=(jax.ShapeDtypeStruct((B, V, H), f32),
                   jax.ShapeDtypeStruct((B, NI, 2, H), f32),
                   jax.ShapeDtypeStruct((B, NI, 2, H), f32)),
        grid=(B, NI),
        in_specs=[pl.BlockSpec((1, V, 2 * H), lambda b, i: (b, 0, 0)),   # hp_va (invariant)
                  pl.BlockSpec((1, TI, 2 * H), lambda b, i: (b, i, 0)),  # hp_ub (per tile)
                  pl.BlockSpec((1, TI * V, H), lambda b, i: (b, i, 0)),  # e tile
                  pl.BlockSpec((H, H), lambda b, i: (0, 0)),             # Wc
                  pl.BlockSpec((1, H), lambda b, i: (0, 0))],            # bc
        out_specs=(pl.BlockSpec((1, TI, H), lambda b, i: (b, i, 0)),
                   pl.BlockSpec((1, 1, 2, H), lambda b, i: (b, i, 0, 0)),
                   pl.BlockSpec((1, 1, 2, H), lambda b, i: (b, i, 0, 0))),
        compiler_params=cp,
    )(hp_va, hp_ub, e2, Wc, bc)

    # ---- Tiny JAX reduction: BatchNorm scale/shift from partial moments -----
    ss_h = _scale_shift(mom_h, B * V, params['gamma_h'], params['beta_h'])
    ss_e = _scale_shift(mom_e, B * V * V, params['gamma_e'], params['beta_e'])

    # ---- Kernel 2: recompute e_pre + normalize + ReLU + residual ------------
    h_out, e_out = pl.pallas_call(
        _finalize_kernel,
        out_shape=(jax.ShapeDtypeStruct((B, V, H), f32),
                   jax.ShapeDtypeStruct((B, V * V, H), f32)),
        grid=(B, NI),
        in_specs=[pl.BlockSpec((1, TI, H), lambda b, i: (b, i, 0)),      # h_in
                  pl.BlockSpec((1, TI * V, H), lambda b, i: (b, i, 0)),  # e_in
                  pl.BlockSpec((1, TI, H), lambda b, i: (b, i, 0)),      # h_pre
                  pl.BlockSpec((1, V, 2 * H), lambda b, i: (b, 0, 0)),   # hp_va (Ah)
                  pl.BlockSpec((1, TI, 2 * H), lambda b, i: (b, i, 0)),  # hp_ub (Bh)
                  pl.BlockSpec((H, H), lambda b, i: (0, 0)),             # Wc
                  pl.BlockSpec((1, H), lambda b, i: (0, 0)),             # bc
                  pl.BlockSpec((2, H), lambda b, i: (0, 0)),             # ss_h
                  pl.BlockSpec((2, H), lambda b, i: (0, 0))],            # ss_e
        out_specs=(pl.BlockSpec((1, TI, H), lambda b, i: (b, i, 0)),
                   pl.BlockSpec((1, TI * V, H), lambda b, i: (b, i, 0))),
        input_output_aliases={0: 0, 1: 1},   # h -> h_out, e -> e_out (in place)
        compiler_params=cp,
    )(h, e2, h_pre, hp_va, hp_ub, Wc, bc, ss_h, ss_e)

    return h_out, e_out.reshape(B, V, V, H)


# ----------------------------------------------------------------------------
# Parameters, pure-JAX reference, demo
# ----------------------------------------------------------------------------
def init_params(key, H):
    """Deterministic synthetic parameters (nn.Linear-style uniform init)."""
    ks = jax.random.split(key, 10)
    s = 1.0 / jnp.sqrt(H)
    w = lambda k: jax.random.uniform(k, (H, H), jnp.float32, -s, s)
    b = lambda k: jax.random.uniform(k, (1, H), jnp.float32, -s, s)
    return dict(
        Wu=w(ks[0]), bu=b(ks[1]),
        Wv=w(ks[2]), bv=b(ks[3]),
        Wa=w(ks[4]), ba=b(ks[5]),
        Wb=w(ks[6]), bb=b(ks[7]),
        Wc=w(ks[8]), bc=b(ks[9]),
        gamma_h=jnp.ones((1, H), jnp.float32), beta_h=jnp.zeros((1, H), jnp.float32),
        gamma_e=jnp.ones((1, H), jnp.float32), beta_e=jnp.zeros((1, H), jnp.float32),
    )


def reference(h, e, params):
    """Pure-JAX f32 reference mirroring the PyTorch dense forward."""
    H = h.shape[-1]
    lin = lambda x, W, bv: x @ W + bv[0]
    Uh = lin(h, params['Wu'], params['bu'])
    Vh = lin(h, params['Wv'], params['bv'])
    Ah = lin(h, params['Wa'], params['ba'])
    Bh = lin(h, params['Wb'], params['bb'])
    Ce = jnp.einsum('bijh,hk->bijk', e, params['Wc']) + params['bc'][0]
    e_new = Ah[:, None, :, :] + Bh[:, :, None, :] + Ce
    gates = jax.nn.sigmoid(e_new)
    h_new = Uh + jnp.sum(gates * Vh[:, None, :, :], axis=2)

    def bn(x, g, be):
        x2 = x.reshape(-1, H)
        m, v = x2.mean(0), x2.var(0)
        return ((x2 - m) / jnp.sqrt(v + _EPS) * g[0] + be[0]).reshape(x.shape)

    h_o = h + jax.nn.relu(bn(h_new, params['gamma_h'], params['beta_h']))
    e_o = e + jax.nn.relu(bn(e_new, params['gamma_e'], params['beta_e']))
    return h_o, e_o


if __name__ == "__main__":
    B, V, H = 2, 16, 32
    key = jax.random.PRNGKey(0)
    kh, ke, kg, kp = jax.random.split(key, 4)
    h = jax.random.normal(kh, (B, V, H), jnp.float32)
    e = jax.random.normal(ke, (B, V, V, H), jnp.float32)
    graph = (jax.random.uniform(kg, (B, V, V)) > 0.5).astype(jnp.float32)
    params = init_params(kp, H)

    h_ref, e_ref = reference(h, e, params)

    fwd = jax.jit(gnn_layer_forward, static_argnames=("row_tile", "mxu_dtype"))

    # Strict numerics check: f32 MXU path vs. pure-f32 reference.
    # row_tile=8 exercises the 2-D (batch, row-tile) grid at this small V.
    h32, e32 = fwd(h, e, graph, params, row_tile=8, mxu_dtype="float32")
    jax.block_until_ready((h32, e32))
    assert jnp.allclose(h32, h_ref, atol=1e-4, rtol=1e-4), "h mismatch (f32)"
    assert jnp.allclose(e32, e_ref, atol=1e-4, rtol=1e-4), "e mismatch (f32)"

    # Fast path: bf16 MXU operands with f32 accumulation (loose tolerance).
    hbf, ebf = fwd(h, e, graph, params, row_tile=8, mxu_dtype="bfloat16")
    jax.block_until_ready((hbf, ebf))
    assert jnp.allclose(hbf, h_ref, atol=1e-1, rtol=1e-1), "h mismatch (bf16)"
    assert jnp.allclose(ebf, e_ref, atol=1e-1, rtol=1e-1), "e mismatch (bf16)"

    print("KERNEL_OK")
</pallas_src>

<mosaic_0001>
module attributes {stable_mosaic.version = 11 : i64} {
  func.func @_edge_kernel(%arg0: i32, %arg1: i32, %arg2: memref<1x16x64xf32, #tpu.memory_space<vmem>>, %arg3: memref<1x8x64xf32, #tpu.memory_space<vmem>>, %arg4: memref<1x128x32xf32, #tpu.memory_space<vmem>>, %arg5: memref<32x32xf32, #tpu.memory_space<vmem>>, %arg6: memref<1x32xf32, #tpu.memory_space<vmem>>, %arg7: memref<1x8x32xf32, #tpu.memory_space<vmem>>, %arg8: memref<1x1x2x32xf32, #tpu.memory_space<vmem>>, %arg9: memref<1x1x2x32xf32, #tpu.memory_space<vmem>>) attributes {dimension_semantics = [#tpu.dimension_semantics<parallel>, #tpu.dimension_semantics<parallel>], iteration_bounds = array<i64: 2, 2>, scalar_prefetch = 0 : i64, scratch_operands = 0 : i64, tpu.core_type = #tpu.core_type<tc>, window_params = [{transform_indices = @transform_0, window_bounds = array<i64: 1, 16, 64>}, {transform_indices = @transform_1, window_bounds = array<i64: 1, 8, 64>}, {transform_indices = @transform_2, window_bounds = array<i64: 1, 128, 32>}, {pipeline_mode = #tpu.pipeline_mode<synchronous>, transform_indices = @transform_3, window_bounds = array<i64: 32, 32>}, {pipeline_mode = #tpu.pipeline_mode<synchronous>, transform_indices = @transform_4, window_bounds = array<i64: 1, 32>}, {transform_indices = @transform_5, window_bounds = array<i64: 1, 8, 32>}, {transform_indices = @transform_6, window_bounds = array<i64: 1, 1, 2, 32>}, {transform_indices = @transform_7, window_bounds = array<i64: 1, 1, 2, 32>}]} {
    %c0 = arith.constant 0 : index
    %c0_0 = arith.constant 0 : index
    %c0_1 = arith.constant 0 : index
    %0 = vector.load %arg2[%c0, %c0_0, %c0_1] : memref<1x16x64xf32, #tpu.memory_space<vmem>>, vector<1x16x64xf32>
    %1 = vector.shape_cast %0 : vector<1x16x64xf32> to vector<16x64xf32>
    %2 = vector.extract_strided_slice %1 {offsets = [0, 0], sizes = [16, 32], strides = [1, 1]} : vector<16x64xf32> to vector<16x32xf32>
    %3 = vector.extract_strided_slice %1 {offsets = [0, 32], sizes = [16, 32], strides = [1, 1]} : vector<16x64xf32> to vector<16x32xf32>
    %c0_2 = arith.constant 0 : index
    %c0_3 = arith.constant 0 : index
    %c0_4 = arith.constant 0 : index
    %4 = vector.load %arg3[%c0_2, %c0_3, %c0_4] : memref<1x8x64xf32, #tpu.memory_space<vmem>>, vector<1x8x64xf32>
    %5 = vector.shape_cast %4 : vector<1x8x64xf32> to vector<8x64xf32>
    %6 = vector.extract_strided_slice %5 {offsets = [0, 0], sizes = [8, 32], strides = [1, 1]} : vector<8x64xf32> to vector<8x32xf32>
    %7 = vector.extract_strided_slice %5 {offsets = [0, 32], sizes = [8, 32], strides = [1, 1]} : vector<8x64xf32> to vector<8x32xf32>
    %c0_5 = arith.constant 0 : index
    %c0_6 = arith.constant 0 : index
    %c0_7 = arith.constant 0 : index
    %8 = vector.load %arg4[%c0_5, %c0_6, %c0_7] : memref<1x128x32xf32, #tpu.memory_space<vmem>>, vector<1x128x32xf32>
    %9 = vector.shape_cast %8 : vector<1x128x32xf32> to vector<128x32xf32>
    %c0_8 = arith.constant 0 : index
    %c0_9 = arith.constant 0 : index
    %10 = vector.load %arg5[%c0_8, %c0_9] : memref<32x32xf32, #tpu.memory_space<vmem>>, vector<32x32xf32>
    %cst = arith.constant dense<0.000000e+00> : vector<128x32xf32>
    %11 = tpu.matmul %9, %10, %cst {dimension_numbers = #tpu.dot_dimension_numbers<[1], [0], [0], [1], [0, 0, 1, 1], [], []>} : vector<128x32xf32>, vector<32x32xf32>, vector<128x32xf32> -> vector<128x32xf32>
    %c0_10 = arith.constant 0 : index
    %c0_11 = arith.constant 0 : index
    %12 = vector.load %arg6[%c0_10, %c0_11] : memref<1x32xf32, #tpu.memory_space<vmem>>, vector<1x32xf32>
    %13 = vector.shape_cast %12 : vector<1x32xf32> to vector<32xf32>
    %14 = vector.shape_cast %13 : vector<32xf32> to vector<1x32xf32>
    %15 = vector.broadcast %14 : vector<1x32xf32> to vector<128x32xf32>
    %16 = arith.addf %11, %15 : vector<128x32xf32>
    %17 = vector.shape_cast %16 : vector<128x32xf32> to vector<8x16x32xf32>
    %18 = vector.shape_cast %3 : vector<16x32xf32> to vector<1x16x32xf32>
    %19 = vector.broadcast %18 : vector<1x16x32xf32> to vector<8x16x32xf32>
    %20 = arith.addf %17, %19 : vector<8x16x32xf32>
    %21 = vector.shape_cast %7 : vector<8x32xf32> to vector<8x1x32xf32>
    %22 = vector.broadcast %21 : vector<8x1x32xf32> to vector<8x16x32xf32>
    %23 = arith.addf %20, %22 : vector<8x16x32xf32>
    %24 = arith.negf %23 : vector<8x16x32xf32>
    %25 = math.exp %24 : vector<8x16x32xf32>
    %cst_12 = arith.constant 1.000000e+00 : f32
    %26 = vector.broadcast %cst_12 : f32 to vector<8x16x32xf32>
    %27 = arith.addf %26, %25 : vector<8x16x32xf32>
    %28 = arith.divf %26, %27 : vector<8x16x32xf32>
    %29 = vector.shape_cast %2 : vector<16x32xf32> to vector<1x16x32xf32>
    %30 = vector.broadcast %29 : vector<1x16x32xf32> to vector<8x16x32xf32>
    %31 = arith.mulf %28, %30 : vector<8x16x32xf32>
    %cst_13 = arith.constant dense<0.000000e+00> : vector<8x32xf32>
    %32 = vector.multi_reduction <add>, %31, %cst_13 [1] : vector<8x16x32xf32> to vector<8x32xf32>
    %33 = arith.addf %6, %32 : vector<8x32xf32>
    %c0_14 = arith.constant 0 : index
    %c0_15 = arith.constant 0 : index
    %c0_16 = arith.constant 0 : index
    %34 = vector.load %arg7[%c0_14, %c0_15, %c0_16] : memref<1x8x32xf32, #tpu.memory_space<vmem>>, vector<1x8x32xf32>
    %35 = vector.shape_cast %34 : vector<1x8x32xf32> to vector<8x32xf32>
    %36 = vector.shape_cast %33 : vector<8x32xf32> to vector<1x8x32xf32>
    tpu.vector_store %arg7[%c0_14, %c0_15, %c0_16], %36 {strides = array<i32>} : memref<1x8x32xf32, #tpu.memory_space<vmem>>, vector<1x8x32xf32>,
    %cst_17 = arith.constant dense<0.000000e+00> : vector<32xf32>
    %37 = vector.multi_reduction <add>, %33, %cst_17 [0] : vector<8x32xf32> to vector<32xf32>
    %38 = vector.shape_cast %37 : vector<32xf32> to vector<1x32xf32>
    %39 = arith.mulf %33, %33 : vector<8x32xf32>
    %cst_18 = arith.constant dense<0.000000e+00> : vector<32xf32>
    %40 = vector.multi_reduction <add>, %39, %cst_18 [0] : vector<8x32xf32> to vector<32xf32>
    %41 = vector.shape_cast %40 : vector<32xf32> to vector<1x32xf32>
    %42 = tpu.concatenate %38, %41 in 0 : vector<1x32xf32>, vector<1x32xf32> -> vector<2x32xf32>
    %c0_19 = arith.constant 0 : index
    %c0_20 = arith.constant 0 : index
    %c0_21 = arith.constant 0 : index
    %c0_22 = arith.constant 0 : index
    %43 = vector.load %arg8[%c0_19, %c0_20, %c0_21, %c0_22] : memref<1x1x2x32xf32, #tpu.memory_space<vmem>>, vector<1x1x2x32xf32>
    %44 = vector.shape_cast %43 : vector<1x1x2x32xf32> to vector<2x32xf32>
    %45 = vector.shape_cast %42 : vector<2x32xf32> to vector<1x1x2x32xf32>
    tpu.vector_store %arg8[%c0_19, %c0_20, %c0_21, %c0_22], %45 {strides = array<i32>} : memref<1x1x2x32xf32, #tpu.memory_space<vmem>>, vector<1x1x2x32xf32>,
    %46 = vector.shape_cast %23 : vector<8x16x32xf32> to vector<128x32xf32>
    %cst_23 = arith.constant dense<0.000000e+00> : vector<32xf32>
    %47 = vector.multi_reduction <add>, %46, %cst_23 [0] : vector<128x32xf32> to vector<32xf32>
    %48 = vector.shape_cast %47 : vector<32xf32> to vector<1x32xf32>
    %49 = arith.mulf %46, %46 : vector<128x32xf32>
    %cst_24 = arith.constant dense<0.000000e+00> : vector<32xf32>
    %50 = vector.multi_reduction <add>, %49, %cst_24 [0] : vector<128x32xf32> to vector<32xf32>
    %51 = vector.shape_cast %50 : vector<32xf32> to vector<1x32xf32>
    %52 = tpu.concatenate %48, %51 in 0 : vector<1x32xf32>, vector<1x32xf32> -> vector<2x32xf32>
    %c0_25 = arith.constant 0 : index
    %c0_26 = arith.constant 0 : index
    %c0_27 = arith.constant 0 : index
    %c0_28 = arith.constant 0 : index
    %53 = vector.load %arg9[%c0_25, %c0_26, %c0_27, %c0_28] : memref<1x1x2x32xf32, #tpu.memory_space<vmem>>, vector<1x1x2x32xf32>
    %54 = vector.shape_cast %53 : vector<1x1x2x32xf32> to vector<2x32xf32>
    %55 = vector.shape_cast %52 : vector<2x32xf32> to vector<1x1x2x32xf32>
    tpu.vector_store %arg9[%c0_25, %c0_26, %c0_27, %c0_28], %55 {strides = array<i32>} : memref<1x1x2x32xf32, #tpu.memory_space<vmem>>, vector<1x1x2x32xf32>,
    return
  }
  func.func @transform_0(%arg0: i32, %arg1: i32) -> (i32, i32, i32) {
    %c0_i32 = arith.constant 0 : i32
    %c0_i32_0 = arith.constant 0 : i32
    %c0_i32_1 = arith.constant 0 : i32
    return %arg0, %c0_i32, %c0_i32_0 : i32, i32, i32
  }
  func.func @transform_1(%arg0: i32, %arg1: i32) -> (i32, i32, i32) {
    %c0_i32 = arith.constant 0 : i32
    %c0_i32_0 = arith.constant 0 : i32
    return %arg0, %arg1, %c0_i32 : i32, i32, i32
  }
  func.func @transform_2(%arg0: i32, %arg1: i32) -> (i32, i32, i32) {
    %c0_i32 = arith.constant 0 : i32
    %c0_i32_0 = arith.constant 0 : i32
    return %arg0, %arg1, %c0_i32 : i32, i32, i32
  }
  func.func @transform_3(%arg0: i32, %arg1: i32) -> (i32, i32) {
    %c0_i32 = arith.constant 0 : i32
    %c0_i32_0 = arith.constant 0 : i32
    %c0_i32_1 = arith.constant 0 : i32
    return %c0_i32, %c0_i32_0 : i32, i32
  }
  func.func @transform_4(%arg0: i32, %arg1: i32) -> (i32, i32) {
    %c0_i32 = arith.constant 0 : i32
    %c0_i32_0 = arith.constant 0 : i32
    %c0_i32_1 = arith.constant 0 : i32
    return %c0_i32, %c0_i32_0 : i32, i32
  }
  func.func @transform_5(%arg0: i32, %arg1: i32) -> (i32, i32, i32) {
    %c0_i32 = arith.constant 0 : i32
    %c0_i32_0 = arith.constant 0 : i32
    return %arg0, %arg1, %c0_i32 : i32, i32, i32
  }
  func.func @transform_6(%arg0: i32, %arg1: i32) -> (i32, i32, i32, i32) {
    %c0_i32 = arith.constant 0 : i32
    %c0_i32_0 = arith.constant 0 : i32
    %c0_i32_1 = arith.constant 0 : i32
    return %arg0, %arg1, %c0_i32, %c0_i32_0 : i32, i32, i32, i32
  }
  func.func @transform_7(%arg0: i32, %arg1: i32) -> (i32, i32, i32, i32) {
    %c0_i32 = arith.constant 0 : i32
    %c0_i32_0 = arith.constant 0 : i32
    %c0_i32_1 = arith.constant 0 : i32
    return %arg0, %arg1, %c0_i32, %c0_i32_0 : i32, i32, i32, i32
  }
}

module attributes {stable_mosaic.version = 11 : i64} {
  func.func @_node_proj_kernel(%arg0: i32, %arg1: i32, %arg2: memref<1x8x32xf32, #tpu.memory_space<vmem>>, %arg3: memref<32x128xf32, #tpu.memory_space<vmem>>, %arg4: memref<1x128xf32, #tpu.memory_space<vmem>>, %arg5: memref<1x8x64xf32, #tpu.memory_space<vmem>>, %arg6: memref<1x8x64xf32, #tpu.memory_space<vmem>>) attributes {dimension_semantics = [#tpu.dimension_semantics<parallel>, #tpu.dimension_semantics<parallel>], iteration_bounds = array<i64: 2, 2>, scalar_prefetch = 0 : i64, scratch_operands = 0 : i64, tpu.core_type = #tpu.core_type<tc>, window_params = [{transform_indices = @transform_0, window_bounds = array<i64: 1, 8, 32>}, {pipeline_mode = #tpu.pipeline_mode<synchronous>, transform_indices = @transform_1, window_bounds = array<i64: 32, 128>}, {pipeline_mode = #tpu.pipeline_mode<synchronous>, transform_indices = @transform_2, window_bounds = array<i64: 1, 128>}, {transform_indices = @transform_3, window_bounds = array<i64: 1, 8, 64>}, {transform_indices = @transform_4, window_bounds = array<i64: 1, 8, 64>}]} {
    %c0 = arith.constant 0 : index
    %c0_0 = arith.constant 0 : index
    %c0_1 = arith.constant 0 : index
    %0 = vector.load %arg2[%c0, %c0_0, %c0_1] : memref<1x8x32xf32, #tpu.memory_space<vmem>>, vector<1x8x32xf32>
    %1 = vector.shape_cast %0 : vector<1x8x32xf32> to vector<8x32xf32>
    %c0_2 = arith.constant 0 : index
    %c0_3 = arith.constant 0 : index
    %2 = vector.load %arg3[%c0_2, %c0_3] : memref<32x128xf32, #tpu.memory_space<vmem>>, vector<32x128xf32>
    %cst = arith.constant dense<0.000000e+00> : vector<8x128xf32>
    %3 = tpu.matmul %1, %2, %cst {dimension_numbers = #tpu.dot_dimension_numbers<[1], [0], [0], [1], [0, 0, 1, 1], [], []>} : vector<8x32xf32>, vector<32x128xf32>, vector<8x128xf32> -> vector<8x128xf32>
    %c0_4 = arith.constant 0 : index
    %c0_5 = arith.constant 0 : index
    %4 = vector.load %arg4[%c0_4, %c0_5] : memref<1x128xf32, #tpu.memory_space<vmem>>, vector<1x128xf32>
    %5 = vector.shape_cast %4 : vector<1x128xf32> to vector<128xf32>
    %6 = vector.shape_cast %5 : vector<128xf32> to vector<1x128xf32>
    %7 = vector.broadcast %6 : vector<1x128xf32> to vector<8x128xf32>
    %8 = arith.addf %3, %7 : vector<8x128xf32>
    %9 = vector.extract_strided_slice %8 {offsets = [0, 0], sizes = [8, 64], strides = [1, 1]} : vector<8x128xf32> to vector<8x64xf32>
    %c0_6 = arith.constant 0 : index
    %c0_7 = arith.constant 0 : index
    %c0_8 = arith.constant 0 : index
    %10 = vector.load %arg5[%c0_6, %c0_7, %c0_8] : memref<1x8x64xf32, #tpu.memory_space<vmem>>, vector<1x8x64xf32>
    %11 = vector.shape_cast %10 : vector<1x8x64xf32> to vector<8x64xf32>
    %12 = vector.shape_cast %9 : vector<8x64xf32> to vector<1x8x64xf32>
    tpu.vector_store %arg5[%c0_6, %c0_7, %c0_8], %12 {strides = array<i32>} : memref<1x8x64xf32, #tpu.memory_space<vmem>>, vector<1x8x64xf32>,
    %13 = vector.extract_strided_slice %8 {offsets = [0, 64], sizes = [8, 64], strides = [1, 1]} : vector<8x128xf32> to vector<8x64xf32>
    %c0_9 = arith.constant 0 : index
    %c0_10 = arith.constant 0 : index
    %c0_11 = arith.constant 0 : index
    %14 = vector.load %arg6[%c0_9, %c0_10, %c0_11] : memref<1x8x64xf32, #tpu.memory_space<vmem>>, vector<1x8x64xf32>
    %15 = vector.shape_cast %14 : vector<1x8x64xf32> to vector<8x64xf32>
    %16 = vector.shape_cast %13 : vector<8x64xf32> to vector<1x8x64xf32>
    tpu.vector_store %arg6[%c0_9, %c0_10, %c0_11], %16 {strides = array<i32>} : memref<1x8x64xf32, #tpu.memory_space<vmem>>, vector<1x8x64xf32>,
    return
  }
  func.func @transform_0(%arg0: i32, %arg1: i32) -> (i32, i32, i32) {
    %c0_i32 = arith.constant 0 : i32
    %c0_i32_0 = arith.constant 0 : i32
    return %arg0, %arg1, %c0_i32 : i32, i32, i32
  }
  func.func @transform_1(%arg0: i32, %arg1: i32) -> (i32, i32) {
    %c0_i32 = arith.constant 0 : i32
    %c0_i32_0 = arith.constant 0 : i32
    %c0_i32_1 = arith.constant 0 : i32
    return %c0_i32, %c0_i32_0 : i32, i32
  }
  func.func @transform_2(%arg0: i32, %arg1: i32) -> (i32, i32) {
    %c0_i32 = arith.constant 0 : i32
    %c0_i32_0 = arith.constant 0 : i32
    %c0_i32_1 = arith.constant 0 : i32
    return %c0_i32, %c0_i32_0 : i32, i32
  }
  func.func @transform_3(%arg0: i32, %arg1: i32) -> (i32, i32, i32) {
    %c0_i32 = arith.constant 0 : i32
    %c0_i32_0 = arith.constant 0 : i32
    return %arg0, %arg1, %c0_i32 : i32, i32, i32
  }
  func.func @transform_4(%arg0: i32, %arg1: i32) -> (i32, i32, i32) {
    %c0_i32 = arith.constant 0 : i32
    %c0_i32_0 = arith.constant 0 : i32
    return %arg0, %arg1, %c0_i32 : i32, i32, i32
  }
}

module attributes {stable_mosaic.version = 11 : i64} {
  func.func @_finalize_kernel(%arg0: i32, %arg1: i32, %arg2: memref<1x8x32xf32, #tpu.memory_space<vmem>>, %arg3: memref<1x128x32xf32, #tpu.memory_space<vmem>>, %arg4: memref<1x8x32xf32, #tpu.memory_space<vmem>>, %arg5: memref<1x16x64xf32, #tpu.memory_space<vmem>>, %arg6: memref<1x8x64xf32, #tpu.memory_space<vmem>>, %arg7: memref<32x32xf32, #tpu.memory_space<vmem>>, %arg8: memref<1x32xf32, #tpu.memory_space<vmem>>, %arg9: memref<2x32xf32, #tpu.memory_space<vmem>>, %arg10: memref<2x32xf32, #tpu.memory_space<vmem>>, %arg11: memref<1x8x32xf32, #tpu.memory_space<vmem>>, %arg12: memref<1x128x32xf32, #tpu.memory_space<vmem>>) attributes {dimension_semantics = [#tpu.dimension_semantics<parallel>, #tpu.dimension_semantics<parallel>], iteration_bounds = array<i64: 2, 2>, scalar_prefetch = 0 : i64, scratch_operands = 0 : i64, tpu.core_type = #tpu.core_type<tc>, window_params = [{transform_indices = @transform_0, window_bounds = array<i64: 1, 8, 32>}, {transform_indices = @transform_1, window_bounds = array<i64: 1, 128, 32>}, {transform_indices = @transform_2, window_bounds = array<i64: 1, 8, 32>}, {transform_indices = @transform_3, window_bounds = array<i64: 1, 16, 64>}, {transform_indices = @transform_4, window_bounds = array<i64: 1, 8, 64>}, {pipeline_mode = #tpu.pipeline_mode<synchronous>, transform_indices = @transform_5, window_bounds = array<i64: 32, 32>}, {pipeline_mode = #tpu.pipeline_mode<synchronous>, transform_indices = @transform_6, window_bounds = array<i64: 1, 32>}, {pipeline_mode = #tpu.pipeline_mode<synchronous>, transform_indices = @transform_7, window_bounds = array<i64: 2, 32>}, {pipeline_mode = #tpu.pipeline_mode<synchronous>, transform_indices = @transform_8, window_bounds = array<i64: 2, 32>}, {transform_indices = @transform_9, window_bounds = array<i64: 1, 8, 32>}, {transform_indices = @transform_10, window_bounds = array<i64: 1, 128, 32>}]} {
    %c0 = arith.constant 0 : index
    %c0_0 = arith.constant 0 : index
    %c0_1 = arith.constant 0 : index
    %0 = vector.load %arg4[%c0, %c0_0, %c0_1] : memref<1x8x32xf32, #tpu.memory_space<vmem>>, vector<1x8x32xf32>
    %1 = vector.shape_cast %0 : vector<1x8x32xf32> to vector<8x32xf32>
    %c0_2 = arith.constant 0 : index
    %c0_3 = arith.constant 0 : index
    %2 = vector.load %arg9[%c0_2, %c0_3] : memref<2x32xf32, #tpu.memory_space<vmem>>, vector<1x32xf32>
    %3 = vector.shape_cast %2 : vector<1x32xf32> to vector<32xf32>
    %4 = vector.shape_cast %3 : vector<32xf32> to vector<1x32xf32>
    %5 = vector.broadcast %4 : vector<1x32xf32> to vector<8x32xf32>
    %6 = arith.mulf %1, %5 : vector<8x32xf32>
    %c1 = arith.constant 1 : index
    %c0_4 = arith.constant 0 : index
    %7 = vector.load %arg9[%c1, %c0_4] : memref<2x32xf32, #tpu.memory_space<vmem>>, vector<1x32xf32>
    %8 = vector.shape_cast %7 : vector<1x32xf32> to vector<32xf32>
    %9 = vector.shape_cast %8 : vector<32xf32> to vector<1x32xf32>
    %10 = vector.broadcast %9 : vector<1x32xf32> to vector<8x32xf32>
    %11 = arith.addf %6, %10 : vector<8x32xf32>
    %c0_5 = arith.constant 0 : index
    %c0_6 = arith.constant 0 : index
    %c0_7 = arith.constant 0 : index
    %12 = vector.load %arg2[%c0_5, %c0_6, %c0_7] : memref<1x8x32xf32, #tpu.memory_space<vmem>>, vector<1x8x32xf32>
    %13 = vector.shape_cast %12 : vector<1x8x32xf32> to vector<8x32xf32>
    %cst = arith.constant 0.000000e+00 : f32
    %14 = vector.broadcast %cst : f32 to vector<8x32xf32>
    %15 = arith.maximumf %11, %14 : vector<8x32xf32>
    %16 = arith.addf %13, %15 : vector<8x32xf32>
    %c0_8 = arith.constant 0 : index
    %c0_9 = arith.constant 0 : index
    %c0_10 = arith.constant 0 : index
    %17 = vector.load %arg11[%c0_8, %c0_9, %c0_10] : memref<1x8x32xf32, #tpu.memory_space<vmem>>, vector<1x8x32xf32>
    %18 = vector.shape_cast %17 : vector<1x8x32xf32> to vector<8x32xf32>
    %19 = vector.shape_cast %16 : vector<8x32xf32> to vector<1x8x32xf32>
    tpu.vector_store %arg11[%c0_8, %c0_9, %c0_10], %19 {strides = array<i32>} : memref<1x8x32xf32, #tpu.memory_space<vmem>>, vector<1x8x32xf32>,
    %c0_11 = arith.constant 0 : index
    %c0_12 = arith.constant 0 : index
    %c0_13 = arith.constant 0 : index
    %20 = vector.load %arg3[%c0_11, %c0_12, %c0_13] : memref<1x128x32xf32, #tpu.memory_space<vmem>>, vector<1x128x32xf32>
    %21 = vector.shape_cast %20 : vector<1x128x32xf32> to vector<128x32xf32>
    %c0_14 = arith.constant 0 : index
    %c0_15 = arith.constant 0 : index
    %22 = vector.load %arg7[%c0_14, %c0_15] : memref<32x32xf32, #tpu.memory_space<vmem>>, vector<32x32xf32>
    %cst_16 = arith.constant dense<0.000000e+00> : vector<128x32xf32>
    %23 = tpu.matmul %21, %22, %cst_16 {dimension_numbers = #tpu.dot_dimension_numbers<[1], [0], [0], [1], [0, 0, 1, 1], [], []>} : vector<128x32xf32>, vector<32x32xf32>, vector<128x32xf32> -> vector<128x32xf32>
    %c0_17 = arith.constant 0 : index
    %c0_18 = arith.constant 0 : index
    %24 = vector.load %arg8[%c0_17, %c0_18] : memref<1x32xf32, #tpu.memory_space<vmem>>, vector<1x32xf32>
    %25 = vector.shape_cast %24 : vector<1x32xf32> to vector<32xf32>
    %26 = vector.shape_cast %25 : vector<32xf32> to vector<1x32xf32>
    %27 = vector.broadcast %26 : vector<1x32xf32> to vector<128x32xf32>
    %28 = arith.addf %23, %27 : vector<128x32xf32>
    %c0_19 = arith.constant 0 : index
    %c0_20 = arith.constant 0 : index
    %c0_21 = arith.constant 0 : index
    %29 = vector.load %arg5[%c0_19, %c0_20, %c0_21] : memref<1x16x64xf32, #tpu.memory_space<vmem>>, vector<1x16x64xf32>
    %30 = vector.shape_cast %29 : vector<1x16x64xf32> to vector<16x64xf32>
    %31 = vector.extract_strided_slice %30 {offsets = [0, 32], sizes = [16, 32], strides = [1, 1]} : vector<16x64xf32> to vector<16x32xf32>
    %c0_22 = arith.constant 0 : index
    %c0_23 = arith.constant 0 : index
    %c0_24 = arith.constant 0 : index
    %32 = vector.load %arg6[%c0_22, %c0_23, %c0_24] : memref<1x8x64xf32, #tpu.memory_space<vmem>>, vector<1x8x64xf32>
    %33 = vector.shape_cast %32 : vector<1x8x64xf32> to vector<8x64xf32>
    %34 = vector.extract_strided_slice %33 {offsets = [0, 32], sizes = [8, 32], strides = [1, 1]} : vector<8x64xf32> to vector<8x32xf32>
    %35 = vector.shape_cast %28 : vector<128x32xf32> to vector<8x16x32xf32>
    %36 = vector.shape_cast %31 : vector<16x32xf32> to vector<1x16x32xf32>
    %37 = vector.broadcast %36 : vector<1x16x32xf32> to vector<8x16x32xf32>
    %38 = arith.addf %35, %37 : vector<8x16x32xf32>
    %39 = vector.shape_cast %34 : vector<8x32xf32> to vector<8x1x32xf32>
    %40 = vector.broadcast %39 : vector<8x1x32xf32> to vector<8x16x32xf32>
    %41 = arith.addf %38, %40 : vector<8x16x32xf32>
    %c0_25 = arith.constant 0 : index
    %c0_26 = arith.constant 0 : index
    %42 = vector.load %arg10[%c0_25, %c0_26] : memref<2x32xf32, #tpu.memory_space<vmem>>, vector<1x32xf32>
    %43 = vector.shape_cast %42 : vector<1x32xf32> to vector<32xf32>
    %44 = vector.shape_cast %43 : vector<32xf32> to vector<1x1x32xf32>
    %45 = vector.broadcast %44 : vector<1x1x32xf32> to vector<8x16x32xf32>
    %46 = arith.mulf %41, %45 : vector<8x16x32xf32>
    %c1_27 = arith.constant 1 : index
    %c0_28 = arith.constant 0 : index
    %47 = vector.load %arg10[%c1_27, %c0_28] : memref<2x32xf32, #tpu.memory_space<vmem>>, vector<1x32xf32>
    %48 = vector.shape_cast %47 : vector<1x32xf32> to vector<32xf32>
    %49 = vector.shape_cast %48 : vector<32xf32> to vector<1x1x32xf32>
    %50 = vector.broadcast %49 : vector<1x1x32xf32> to vector<8x16x32xf32>
    %51 = arith.addf %46, %50 : vector<8x16x32xf32>
    %52 = vector.shape_cast %21 : vector<128x32xf32> to vector<8x16x32xf32>
    %cst_29 = arith.constant 0.000000e+00 : f32
    %53 = vector.broadcast %cst_29 : f32 to vector<8x16x32xf32>
    %54 = arith.maximumf %51, %53 : vector<8x16x32xf32>
    %55 = arith.addf %52, %54 : vector<8x16x32xf32>
    %56 = vector.shape_cast %55 : vector<8x16x32xf32> to vector<128x32xf32>
    %c0_30 = arith.constant 0 : index
    %c0_31 = arith.constant 0 : index
    %c0_32 = arith.constant 0 : index
    %57 = vector.load %arg12[%c0_30, %c0_31, %c0_32] : memref<1x128x32xf32, #tpu.memory_space<vmem>>, vector<1x128x32xf32>
    %58 = vector.shape_cast %57 : vector<1x128x32xf32> to vector<128x32xf32>
    %59 = vector.shape_cast %56 : vector<128x32xf32> to vector<1x128x32xf32>
    tpu.vector_store %arg12[%c0_30, %c0_31, %c0_32], %59 {strides = array<i32>} : memref<1x128x32xf32, #tpu.memory_space<vmem>>, vector<1x128x32xf32>,
    return
  }
  func.func @transform_0(%arg0: i32, %arg1: i32) -> (i32, i32, i32) {
    %c0_i32 = arith.constant 0 : i32
    %c0_i32_0 = arith.constant 0 : i32
    return %arg0, %arg1, %c0_i32 : i32, i32, i32
  }
  func.func @transform_1(%arg0: i32, %arg1: i32) -> (i32, i32, i32) {
    %c0_i32 = arith.constant 0 : i32
    %c0_i32_0 = arith.constant 0 : i32
    return %arg0, %arg1, %c0_i32 : i32, i32, i32
  }
  func.func @transform_2(%arg0: i32, %arg1: i32) -> (i32, i32, i32) {
    %c0_i32 = arith.constant 0 : i32
    %c0_i32_0 = arith.constant 0 : i32
    return %arg0, %arg1, %c0_i32 : i32, i32, i32
  }
  func.func @transform_3(%arg0: i32, %arg1: i32) -> (i32, i32, i32) {
    %c0_i32 = arith.constant 0 : i32
    %c0_i32_0 = arith.constant 0 : i32
    %c0_i32_1 = arith.constant 0 : i32
    return %arg0, %c0_i32, %c0_i32_0 : i32, i32, i32
  }
  func.func @transform_4(%arg0: i32, %arg1: i32) -> (i32, i32, i32) {
    %c0_i32 = arith.constant 0 : i32
    %c0_i32_0 = arith.constant 0 : i32
    return %arg0, %arg1, %c0_i32 : i32, i32, i32
  }
  func.func @transform_5(%arg0: i32, %arg1: i32) -> (i32, i32) {
    %c0_i32 = arith.constant 0 : i32
    %c0_i32_0 = arith.constant 0 : i32
    %c0_i32_1 = arith.constant 0 : i32
    return %c0_i32, %c0_i32_0 : i32, i32
  }
  func.func @transform_6(%arg0: i32, %arg1: i32) -> (i32, i32) {
    %c0_i32 = arith.constant 0 : i32
    %c0_i32_0 = arith.constant 0 : i32
    %c0_i32_1 = arith.constant 0 : i32
    return %c0_i32, %c0_i32_0 : i32, i32
  }
  func.func @transform_7(%arg0: i32, %arg1: i32) -> (i32, i32) {
    %c0_i32 = arith.constant 0 : i32
    %c0_i32_0 = arith.constant 0 : i32
    %c0_i32_1 = arith.constant 0 : i32
    return %c0_i32, %c0_i32_0 : i32, i32
  }
  func.func @transform_8(%arg0: i32, %arg1: i32) -> (i32, i32) {
    %c0_i32 = arith.constant 0 : i32
    %c0_i32_0 = arith.constant 0 : i32
    %c0_i32_1 = arith.constant 0 : i32
    return %c0_i32, %c0_i32_0 : i32, i32
  }
  func.func @transform_9(%arg0: i32, %arg1: i32) -> (i32, i32, i32) {
    %c0_i32 = arith.constant 0 : i32
    %c0_i32_0 = arith.constant 0 : i32
    return %arg0, %arg1, %c0_i32 : i32, i32, i32
  }
  func.func @transform_10(%arg0: i32, %arg1: i32) -> (i32, i32, i32) {
    %c0_i32 = arith.constant 0 : i32
    %c0_i32_0 = arith.constant 0 : i32
    return %arg0, %arg1, %c0_i32 : i32, i32, i32
  }
}

</mosaic_0001>

<llo_original>
// kernel: gnn_layer_forward.3
$region0: #{gnn_layer_forward.3}
  #allocation0 [shape = 'u32[]', space=smem, size = 0x4, offset = 0x4, fixed_abs, tag = 'smem constant byte address 0x4 - core index']
  #allocation1 [shape = 'u32[144,128]{1,0:T(1,128)}', space=vmem, size = 0x12000, scoped, tag = 'internal scratch']
  %s0 = inlined_call_operand.vmem [shape: f32[2,16,32], index: 0, kind: input, shape index: {}]
  %s1 = inlined_call_operand.vmem [shape: f32[32,128], index: 1, kind: input, shape index: {}]
  %s2 = inlined_call_operand.vmem [shape: f32[1,128], index: 2, kind: input, shape index: {}]
  %s3 = inlined_call_operand.vmem [shape: f32[2,16,64], index: 3, kind: output, shape index: {0}]
  %s4 = inlined_call_operand.vmem [shape: f32[2,16,64], index: 4, kind: output, shape index: {1}]
  %5 = xla_tuple %s3, %s4
  %s6 = sld [smem:[#allocation0]]
  $region53: #{gnn_layer_forward.3} parent=0
    _
  %s8 = ssub.s32 1, %s6
  %s9 = scalar_select 0, %s8, %s6
  loop: start=0, step=1, limit=6
  $region2: #{gnn_layer_forward.3} parent=0 // loop_pre_header
    _
  $region3: #{gnn_layer_forward.3} parent=0 // loop_header
    %s11 = sphi 0, %s15
    %p12 = scmp.ge.s32.totalorder %s11, 6
    %s18 = sphi 0, %s30
    %s19 = sphi 0, %s26
    %s20 = sphi 0, %s18
    %s21 = sphi 0, %s19
    %s22 = sphi 0, %s20
    %s23 = sphi 0, %s21
    %s35 = sphi 0, %s37
    %s38 = sphi 0, %s35
    %s39 = sphi 0, %s38
    %s55 = sphi 0, %s39
    %s59 = sphi 0, %s59
    %s61 = sphi 0, %s59
    %s62 = sphi 0, %s61
    %s76 = sphi 0, %s62
    %s80 = sphi 0, %s80
    %s82 = sphi 0, %s80
    %s83 = sphi 0, %s82
    %s97 = sphi 0, %s83
    %s105 = sphi 0, %s107
    %s108 = sphi 0, %s105
    %s109 = sphi 0, %s108
    %s125 = sphi 0, %s109
    %s133 = sphi 0, %s135
    %s136 = sphi 0, %s133
    %s137 = sphi 0, %s136
    %s153 = sphi 0, %s137
  $region4: #{gnn_layer_forward.3} parent=0 // loop_header_branch
    %14 = sbr.rel (%p12) target = $region8
  $region5: #{gnn_layer_forward.3} parent=0 // loop_body
    %s16 = ssub.s32 %s11, 1
    %s17 = ssub.s32 %s11, 2
    %s24 = sadd.s32 1, %s19
    %p25 = scmp.ge.s32.totalorder %s24, 2
    %s26 = scalar_select %p25, 0, %s24
    %s27 = sadd.s32 1, %s18
    %s28 = scalar_select %p25, %s27, %s18
    %p29 = scmp.ge.s32.totalorder %s28, 2
    %s30 = scalar_select %p29, 0, %s28
    %s31 = ssub.s32 %s18, %s30
    %s32 = ssub.s32 %s19, %s26
    %s33 = sor.u32 %s31, %s32
    %p34 = scmp.eq.s32.totalorder %s33, 0
    %s36 = sadd.s32 %s35, 1
    %s37 = scalar_select %p34, %s35, %s36
    %p40 = pneg %p34
    %p41 = scmp.eq.s32.totalorder %s11, 3
    %p42 = por %p40, %p41
    %p43 = scmp.ne.s32.totalorder %s35, %s38
    %p44 = scmp.eq.s32.totalorder %s11, 0
    %p45 = por %p43, %p44
    %p46 = scmp.ne.s32.totalorder %s35, %s38
    %p47 = scmp.eq.s32.totalorder %s16, 3
    %p48 = por %p46, %p47
    %p49 = scmp.ne.s32.totalorder %s38, %s39
    %p50 = scmp.eq.s32.totalorder %s16, 0
    %p51 = por %p49, %p50
    %p52 = scmp.ne.s32.totalorder %s38, %s39
    %p53 = scmp.eq.s32.totalorder %s17, 3
    %p54 = por %p52, %p53
    %p56 = scmp.ne.s32.totalorder %s39, %s55
    %p57 = scmp.eq.s32.totalorder %s17, 0
    %p58 = por %p56, %p57
    %s60 = sadd.s32 %s59, 1
    %p63 = scmp.eq.s32.totalorder %s11, 3
    %p64 = scmp.ne.s32.totalorder %s59, %s61
    %p65 = scmp.eq.s32.totalorder %s11, 0
    %p66 = por %p64, %p65
    %p67 = scmp.ne.s32.totalorder %s59, %s61
    %p68 = scmp.eq.s32.totalorder %s16, 3
    %p69 = por %p67, %p68
    %p70 = scmp.ne.s32.totalorder %s61, %s62
    %p71 = scmp.eq.s32.totalorder %s16, 0
    %p72 = por %p70, %p71
    %p73 = scmp.ne.s32.totalorder %s61, %s62
    %p74 = scmp.eq.s32.totalorder %s17, 3
    %p75 = por %p73, %p74
    %p77 = scmp.ne.s32.totalorder %s62, %s76
    %p78 = scmp.eq.s32.totalorder %s17, 0
    %p79 = por %p77, %p78
    %s81 = sadd.s32 %s80, 1
    %p84 = scmp.eq.s32.totalorder %s11, 3
    %p85 = scmp.ne.s32.totalorder %s80, %s82
    %p86 = scmp.eq.s32.totalorder %s11, 0
    %p87 = por %p85, %p86
    %p88 = scmp.ne.s32.totalorder %s80, %s82
    %p89 = scmp.eq.s32.totalorder %s16, 3
    %p90 = por %p88, %p89
    %p91 = scmp.ne.s32.totalorder %s82, %s83
    %p92 = scmp.eq.s32.totalorder %s16, 0
    %p93 = por %p91, %p92
    %p94 = scmp.ne.s32.totalorder %s82, %s83
    %p95 = scmp.eq.s32.totalorder %s17, 3
    %p96 = por %p94, %p95
    %p98 = scmp.ne.s32.totalorder %s83, %s97
    %p99 = scmp.eq.s32.totalorder %s17, 0
    %p100 = por %p98, %p99
    %s101 = ssub.s32 %s18, %s30
    %s102 = ssub.s32 %s19, %s26
    %s103 = sor.u32 %s101, %s102
    %p104 = scmp.eq.s32.totalorder %s103, 0
    %s106 = sadd.s32 %s105, 1
    %s107 = scalar_select %p104, %s105, %s106
    %p110 = pneg %p104
    %p111 = scmp.eq.s32.totalorder %s11, 3
    %p112 = por %p110, %p111
    %p113 = scmp.ne.s32.totalorder %s105, %s108
    %p114 = scmp.eq.s32.totalorder %s11, 0
    %p115 = por %p113, %p114
    %p116 = scmp.ne.s32.totalorder %s105, %s108
    %p117 = scmp.eq.s32.totalorder %s16, 3
    %p118 = por %p116, %p117
    %p119 = scmp.ne.s32.totalorder %s108, %s109
    %p120 = scmp.eq.s32.totalorder %s16, 0
    %p121 = por %p119, %p120
    %p122 = scmp.ne.s32.totalorder %s108, %s109
    %p123 = scmp.eq.s32.totalorder %s17, 3
    %p124 = por %p122, %p123
    %p126 = scmp.ne.s32.totalorder %s109, %s125
    %p127 = scmp.eq.s32.totalorder %s17, 0
    %p128 = por %p126, %p127
    %s129 = ssub.s32 %s18, %s30
    %s130 = ssub.s32 %s19, %s26
    %s131 = sor.u32 %s129, %s130
    %p132 = scmp.eq.s32.totalorder %s131, 0
    %s134 = sadd.s32 %s133, 1
    %s135 = scalar_select %p132, %s133, %s134
    %p138 = pneg %p132
    %p139 = scmp.eq.s32.totalorder %s11, 3
    %p140 = por %p138, %p139
    %p141 = scmp.ne.s32.totalorder %s133, %s136
    %p142 = scmp.eq.s32.totalorder %s11, 0
    %p143 = por %p141, %p142
    %p144 = scmp.ne.s32.totalorder %s133, %s136
    %p145 = scmp.eq.s32.totalorder %s16, 3
    %p146 = por %p144, %p145
    %p147 = scmp.ne.s32.totalorder %s136, %s137
    %p148 = scmp.eq.s32.totalorder %s16, 0
    %p149 = por %p147, %p148
    %p150 = scmp.ne.s32.totalorder %s136, %s137
    %p151 = scmp.eq.s32.totalorder %s17, 3
    %p152 = por %p150, %p151
    %p154 = scmp.ne.s32.totalorder %s137, %s153
    %p155 = scmp.eq.s32.totalorder %s17, 0
    %p156 = por %p154, %p155
    %p157 = scmp.le.s32.totalorder 1, %s11
    %p158 = scmp.lt.s32.totalorder %s11, 5
    %p159 = pnand %p157, %p158
    %p160 = pneg %p159
    // Predicated region
    $region9: #{gnn_layer_forward.3} parent=5 // pred_check
      _
    $region10: #{gnn_layer_forward.3} parent=5 // pred_check_branch
      %162 = sbr.rel (%p159) target = $region12
    $region11: #{gnn_layer_forward.3} parent=5 // pred_region
      %s163 = ssub.s32 %s11, 1
      // Predicated region
      $region13: #{gnn_layer_forward.3} parent=11 // pred_check
        %p164 = pneg %p72
      $region14: #{gnn_layer_forward.3} parent=11 // pred_check_branch
        %166 = sbr.rel (%p164) target = $region16
      $region15: #{gnn_layer_forward.3} parent=11 // pred_region
        _
      $region16: #{gnn_layer_forward.3} parent=11 // pred_fallthru
        _
      // Predicated region
      $region17: #{gnn_layer_forward.3} parent=11 // pred_check
        %p167 = pneg %p93
      $region18: #{gnn_layer_forward.3} parent=11 // pred_check_branch
        %169 = sbr.rel (%p167) target = $region20
      $region19: #{gnn_layer_forward.3} parent=11 // pred_region
        _
      $region20: #{gnn_layer_forward.3} parent=11 // pred_fallthru
        _
    $region12: #{gnn_layer_forward.3} parent=5 // pred_fallthru
      _
    %p170 = scmp.lt.s32.totalorder %s11, 4
    // Predicated region
    $region21: #{gnn_layer_forward.3} parent=5 // pred_check
      %p171 = pneg %p170
    $region22: #{gnn_layer_forward.3} parent=5 // pred_check_branch
      %173 = sbr.rel (%p171) target = $region24
    $region23: #{gnn_layer_forward.3} parent=5 // pred_region
      // Predicated region
      $region25: #{gnn_layer_forward.3} parent=23 // pred_check
        %p174 = pneg %p45
      $region26: #{gnn_layer_forward.3} parent=23 // pred_check_branch
        %176 = sbr.rel (%p174) target = $region28
      $region27: #{gnn_layer_forward.3} parent=23 // pred_region
        %p177 = scmp.lt.s32.totalorder %s18, 1
        %s178 = scalar_select %p177, %s18, 1
        %p179 = scmp.lt.s32.totalorder %s19, 1
        %s180 = scalar_select %p179, %s19, 1
        %s181 = smul.addr %s178, 2
        %s182 = sadd.s32 %s180, %s181
        %s183 = smul.addr %s182, 8
        %s184 = scalar_lea.vmem %s0, %s183
      $region28: #{gnn_layer_forward.3} parent=23 // pred_fallthru
        _
    $region24: #{gnn_layer_forward.3} parent=5 // pred_fallthru
      _
    %p185 = scmp.le.s32.totalorder 1, %s11
    %p186 = scmp.lt.s32.totalorder %s11, 5
    %p187 = pnand %p185, %p186
    %p188 = pneg %p187
    // Predicated region
    $region29: #{gnn_layer_forward.3} parent=5 // pred_check
      _
    $region30: #{gnn_layer_forward.3} parent=5 // pred_check_branch
      %190 = sbr.rel (%p187) target = $region32
    $region31: #{gnn_layer_forward.3} parent=5 // pred_region
      %s191 = ssub.s32 %s11, 1
      %p192 = scmp.lt.s32.totalorder %s20, 1
      %s193 = scalar_select %p192, %s20, 1
      %p194 = scmp.lt.s32.totalorder %s21, 1
      %s195 = scalar_select %p194, %s21, 1
      %s196 = smul.addr %s193, 2
      %s197 = sadd.s32 %s195, %s196
      %s198 = smul.addr %s197, 8
      %s199 = scalar_lea.vmem %s0, %s198
      %p200 = pneg %p51
      %p201 = pneg %p48
      %p202 = pneg %p72
      %p203 = pneg %p69
      %p204 = pneg %p93
      %p205 = pneg %p90
      %p206 = pneg %p121
      %p207 = pneg %p118
      %p208 = scmp.lt.s32.totalorder %s20, 1
      %s209 = scalar_select %p208, %s20, 1
      %p210 = scmp.lt.s32.totalorder %s21, 1
      %s211 = scalar_select %p210, %s21, 1
      %s212 = smul.addr %s209, 2
      %s213 = sadd.s32 %s211, %s212
      %s214 = smul.addr %s213, 8
      %s215 = scalar_lea.vmem %s3, %s214
      %p216 = pneg %p149
      %p217 = pneg %p146
      %p218 = scmp.lt.s32.totalorder %s20, 1
      %s219 = scalar_select %p218, %s20, 1
      %p220 = scmp.lt.s32.totalorder %s21, 1
      %s221 = scalar_select %p220, %s21, 1
      %s222 = smul.addr %s219, 2
      %s223 = sadd.s32 %s221, %s222
      %s224 = smul.addr %s223, 8
      %s225 = scalar_lea.vmem %s4, %s224
      %p226 = scmp.lt.s32.totalorder %s20, 1
      %s227 = scalar_select %p226, %s20, 1
      %p228 = scmp.lt.s32.totalorder %s21, 1
      %s229 = scalar_select %p228, %s21, 1
      %s230 = smul.addr %s227, 2
      %s231 = sadd.s32 %s229, %s230
      %s232 = smul.addr %s231, 8
      %s233 = scalar_lea.vmem %s0, %s232
      %p234 = scmp.lt.s32.totalorder %s20, 1
      %s235 = scalar_select %p234, %s20, 1
      %p236 = scmp.lt.s32.totalorder %s21, 1
      %s237 = scalar_select %p236, %s21, 1
      %s238 = smul.addr %s235, 2
      %s239 = sadd.s32 %s237, %s238
      %s240 = smul.addr %s239, 8
      %s241 = scalar_lea.vmem %s3, %s240
      %p242 = scmp.lt.s32.totalorder %s20, 1
      %s243 = scalar_select %p242, %s20, 1
      %p244 = scmp.lt.s32.totalorder %s21, 1
      %s245 = scalar_select %p244, %s21, 1
      %s246 = smul.addr %s243, 2
      %s247 = sadd.s32 %s245, %s246
      %s248 = smul.addr %s247, 8
      %s249 = scalar_lea.vmem %s4, %s248
      %v250 = vld [vmem:[%s233] sm:$0xff]
      %v251 = vld [vmem:[%s1] sm:$0xff]
      %v252 = vld [vmem:[%s1 + $0x8] sm:$0xff]
      %v253 = vld [vmem:[%s1 + $0x10] sm:$0xff]
      %v254 = vld [vmem:[%s1 + $0x18] sm:$0xff]
      %v255 = vld [vmem:[%s2] sm:$0x1]
      %v257 = vlaneseq
      %v258 = vshrl.u32 %v257, 7
      %v259 = vsub.s32 0, %v258
      %v260 = vrot.slane %v255, %v259
      %vm262 = vcmask 261120
      %v264 = vsel %vm262, %v250, 0
      %266 = vmatprep.subr.mxu0 0.0
      %267 = vmatpush1.msra.mxu0 %v251
      %268 = vmatprep.subr.mxu0 0.0
      %269 = vmatpush1.msra.mxu0 %v252
      %270 = vmatprep.subr.mxu0 0.0
      %271 = vmatpush1.msra.mxu0 %v253
      %272 = vmatprep.subr.mxu0 0.0
      %273 = vmatpush1.msra.mxu0 %v254
      %274 = vmatprep.subr.mxu0 0.0
      %275 = vmatpush1.msra.mxu0 0.0
      %276 = vmatprep.subr.mxu0 0.0
      %277 = vmatpush1.msra.mxu0 0.0
      %278 = vmatprep.subr.mxu0 0.0
      %279 = vmatpush1.msra.mxu0 0.0
      %280 = vmatprep.subr.mxu0 0.0
      %281 = vmatpush1.msra.mxu0 0.0
      %282 = vmatprep.subr.mxu0 0.0
      %283 = vmatpush1.msra.mxu0 0.0
      %284 = vmatprep.subr.mxu0 0.0
      %285 = vmatpush1.msra.mxu0 0.0
      %286 = vmatprep.subr.mxu0 0.0
      %287 = vmatpush1.msra.mxu0 0.0
      %288 = vmatprep.subr.mxu0 0.0
      %289 = vmatpush1.msra.mxu0 0.0
      %290 = vmatprep.subr.mxu0 0.0
      %291 = vmatpush1.msra.mxu0 0.0
      %292 = vmatprep.subr.mxu0 0.0
      %293 = vmatpush1.msra.mxu0 0.0
      %294 = vmatprep.subr.mxu0 0.0
      %295 = vmatpush1.msra.mxu0 0.0
      %296 = vmatprep.subr.mxu0 0.0
      %297 = vmatpush1.msra.mxu0 0.0
      %298 = vmatprep.subr.mxu0 0.0
      %299 = vmatpush1.msra.mxu0 0.0
      %300 = vmatprep.subr.mxu0 0.0
      %301 = vmatpush1.msra.mxu0 0.0
      %302 = vmatprep.subr.mxu0 0.0
      %303 = vmatpush1.msra.mxu0 0.0
      %304 = vmatprep.subr.mxu0 0.0
      %305 = vmatpush1.msra.mxu0 0.0
      %306 = vmatprep.subr.mxu0 0.0
      %307 = vmatpush1.msra.mxu0 0.0
      %308 = vmatprep.subr.mxu0 0.0
      %309 = vmatpush1.msra.mxu0 0.0
      %310 = vmatprep.subr.mxu0 0.0
      %311 = vmatpush1.msra.mxu0 0.0
      %312 = vmatprep.subr.mxu0 0.0
      %313 = vmatpush1.msra.mxu0 0.0
      %314 = vmatprep.subr.mxu0 0.0
      %315 = vmatpush1.msra.mxu0 0.0
      %316 = vmatprep.subr.mxu0 0.0
      %317 = vmatpush1.msra.mxu0 0.0
      %318 = vmatprep.subr.mxu0 0.0
      %319 = vmatpush1.msra.mxu0 0.0
      %320 = vmatprep.subr.mxu0 0.0
      %321 = vmatpush1.msra.mxu0 0.0
      %322 = vmatprep.subr.mxu0 0.0
      %323 = vmatpush1.msra.mxu0 0.0
      %324 = vmatprep.subr.mxu0 0.0
      %325 = vmatpush1.msra.mxu0 0.0
      %326 = vmatprep.subr.mxu0 0.0
      %327 = vmatpush1.msra.mxu0 0.0
      %328 = vmatprep.subr.mxu0 0.0
      %329 = vmatpush1.msra.mxu0 0.0
      %330 = vmatprep.mubr.f32.mxu0 0.0
      %331 = vmatmul.mubr.f32.gmra.mrb[0].mxu0 %v264
      %v332 = vpop.f32.mrb[0].mxu0
      %v333 = vadd.f32 %v260, %v332
      %v334 = vpop.f32.mrb[0].mxu0
      %335 = vdwg.mxu0
      %vm336 = vcmask 523264
      %337 = vst.msk [vmem:[%s241] sm:$0xff] %vm336, %v333
      %339 = vrot.lane.b32.xlu0 %v333, 64
      %v340 = vpop.permute.xlu0 %339
      %342 = vst.msk [vmem:[%s249] sm:$0xff] %vm336, %v340
      %p343 = scmp.lt.s32.totalorder %s20, 1
      %s344 = scalar_select %p343, %s20, 1
      %p345 = scmp.lt.s32.totalorder %s21, 1
      %s346 = scalar_select %p345, %s21, 1
      %s347 = smul.addr %s344, 2
      %s348 = sadd.s32 %s346, %s347
      %s349 = smul.addr %s348, 8
      %s350 = scalar_lea.vmem %s3, %s349
      %p351 = scmp.lt.s32.totalorder %s20, 1
      %s352 = scalar_select %p351, %s20, 1
      %p353 = scmp.lt.s32.totalorder %s21, 1
      %s354 = scalar_select %p353, %s21, 1
      %s355 = smul.addr %s352, 2
      %s356 = sadd.s32 %s354, %s355
      %s357 = smul.addr %s356, 8
      %s358 = scalar_lea.vmem %s4, %s357
      // Predicated region
      $region33: #{gnn_layer_forward.3} parent=31 // pred_check
        %p359 = pneg %p118
      $region34: #{gnn_layer_forward.3} parent=31 // pred_check_branch
        %361 = sbr.rel (%p359) target = $region36
      $region35: #{gnn_layer_forward.3} parent=31 // pred_region
        _
      $region36: #{gnn_layer_forward.3} parent=31 // pred_fallthru
        _
      // Predicated region
      $region37: #{gnn_layer_forward.3} parent=31 // pred_check
        %p362 = pneg %p146
      $region38: #{gnn_layer_forward.3} parent=31 // pred_check_branch
        %364 = sbr.rel (%p362) target = $region40
      $region39: #{gnn_layer_forward.3} parent=31 // pred_region
        _
      $region40: #{gnn_layer_forward.3} parent=31 // pred_fallthru
        _
    $region32: #{gnn_layer_forward.3} parent=5 // pred_fallthru
      _
    %p365 = scmp.le.s32.totalorder 2, %s11
    // Predicated region
    $region41: #{gnn_layer_forward.3} parent=5 // pred_check
      %p366 = pneg %p365
    $region42: #{gnn_layer_forward.3} parent=5 // pred_check_branch
      %368 = sbr.rel (%p366) target = $region44
    $region43: #{gnn_layer_forward.3} parent=5 // pred_region
      %s369 = ssub.s32 %s11, 2
      // Predicated region
      $region45: #{gnn_layer_forward.3} parent=43 // pred_check
        %p370 = pneg %p124
      $region46: #{gnn_layer_forward.3} parent=43 // pred_check_branch
        %372 = sbr.rel (%p370) target = $region48
      $region47: #{gnn_layer_forward.3} parent=43 // pred_region
        %p373 = scmp.lt.s32.totalorder %s22, 1
        %s374 = scalar_select %p373, %s22, 1
        %p375 = scmp.lt.s32.totalorder %s23, 1
        %s376 = scalar_select %p375, %s23, 1
        %s377 = smul.addr %s374, 2
        %s378 = sadd.s32 %s376, %s377
        %s379 = smul.addr %s378, 8
        %s380 = scalar_lea.vmem %s3, %s379
      $region48: #{gnn_layer_forward.3} parent=43 // pred_fallthru
        _
      // Predicated region
      $region49: #{gnn_layer_forward.3} parent=43 // pred_check
        %p381 = pneg %p152
      $region50: #{gnn_layer_forward.3} parent=43 // pred_check_branch
        %383 = sbr.rel (%p381) target = $region52
      $region51: #{gnn_layer_forward.3} parent=43 // pred_region
        %p384 = scmp.lt.s32.totalorder %s22, 1
        %s385 = scalar_select %p384, %s22, 1
        %p386 = scmp.lt.s32.totalorder %s23, 1
        %s387 = scalar_select %p386, %s23, 1
        %s388 = smul.addr %s385, 2
        %s389 = sadd.s32 %s387, %s388
        %s390 = smul.addr %s389, 8
        %s391 = scalar_lea.vmem %s4, %s390
      $region52: #{gnn_layer_forward.3} parent=43 // pred_fallthru
        _
    $region44: #{gnn_layer_forward.3} parent=5 // pred_fallthru
      _
  $region6: #{gnn_layer_forward.3} parent=0 // loop_footer
    %s15 = sadd.s32 1, %s11
  $region7: #{gnn_layer_forward.3} parent=0 // loop_footer_branch
    %10 = sbr.rel target = $region3
  $region8: #{gnn_layer_forward.3} parent=0 // loop_exit
    _

// kernel: gnn_layer_forward.4
$region0: #{gnn_layer_forward.4}
  #allocation0 [shape = 'u32[]', space=smem, size = 0x4, offset = 0x4, fixed_abs, tag = 'smem constant byte address 0x4 - core index']
  #allocation1 [shape = 'u32[144,128]{1,0:T(1,128)}', space=vmem, size = 0x12000, scoped, tag = 'internal scratch']
  %s0 = inlined_call_operand.vmem [shape: f32[2,16,64], index: 0, kind: input, shape index: {}]
  %s1 = inlined_call_operand.vmem [shape: f32[2,16,64], index: 1, kind: input, shape index: {}]
  %s2 = inlined_call_operand.vmem [shape: f32[2,256,32], index: 2, kind: input, shape index: {}]
  %s3 = inlined_call_operand.vmem [shape: f32[32,32], index: 3, kind: input, shape index: {}]
  %s4 = inlined_call_operand.vmem [shape: f32[1,32], index: 4, kind: input, shape index: {}]
  %s5 = inlined_call_operand.vmem [shape: f32[2,16,32], index: 5, kind: output, shape index: {0}]
  %s6 = inlined_call_operand.vmem [shape: f32[2,2,2,32], index: 6, kind: output, shape index: {1}]
  %s7 = inlined_call_operand.vmem [shape: f32[2,2,2,32], index: 7, kind: output, shape index: {2}]
  %8 = xla_tuple %s5, %s6, %s7
  %s9 = sld [smem:[#allocation0]]
  $region69: #{gnn_layer_forward.4} parent=0
    _
  %s11 = ssub.s32 1, %s9
  %s12 = scalar_select 0, %s11, %s9
  loop: start=0, step=1, limit=6
  $region2: #{gnn_layer_forward.4} parent=0 // loop_pre_header
    _
  $region3: #{gnn_layer_forward.4} parent=0 // loop_header
    %s14 = sphi 0, %s18
    %p15 = scmp.ge.s32.totalorder %s14, 6
    %s21 = sphi 0, %s33
    %s22 = sphi 0, %s29
    %s23 = sphi 0, %s21
    %s24 = sphi 0, %s22
    %s25 = sphi 0, %s23
    %s26 = sphi 0, %s24
    %s36 = sphi 0, %s38
    %s39 = sphi 0, %s36
    %s40 = sphi 0, %s39
    %s56 = sphi 0, %s40
    %s64 = sphi 0, %s66
    %s67 = sphi 0, %s64
    %s68 = sphi 0, %s67
    %s84 = sphi 0, %s68
    %s92 = sphi 0, %s94
    %s95 = sphi 0, %s92
    %s96 = sphi 0, %s95
    %s112 = sphi 0, %s96
    %s116 = sphi 0, %s116
    %s118 = sphi 0, %s116
    %s119 = sphi 0, %s118
    %s133 = sphi 0, %s119
    %s137 = sphi 0, %s137
    %s139 = sphi 0, %s137
    %s140 = sphi 0, %s139
    %s154 = sphi 0, %s140
    %s162 = sphi 0, %s164
    %s165 = sphi 0, %s162
    %s166 = sphi 0, %s165
    %s182 = sphi 0, %s166
    %s190 = sphi 0, %s192
    %s193 = sphi 0, %s190
    %s194 = sphi 0, %s193
    %s210 = sphi 0, %s194
    %s218 = sphi 0, %s220
    %s221 = sphi 0, %s218
    %s222 = sphi 0, %s221
    %s238 = sphi 0, %s222
  $region4: #{gnn_layer_forward.4} parent=0 // loop_header_branch
    %17 = sbr.rel (%p15) target = $region8
  $region5: #{gnn_layer_forward.4} parent=0 // loop_body
    %s19 = ssub.s32 %s14, 1
    %s20 = ssub.s32 %s14, 2
    %s27 = sadd.s32 1, %s22
    %p28 = scmp.ge.s32.totalorder %s27, 2
    %s29 = scalar_select %p28, 0, %s27
    %s30 = sadd.s32 1, %s21
    %s31 = scalar_select %p28, %s30, %s21
    %p32 = scmp.ge.s32.totalorder %s31, 2
    %s33 = scalar_select %p32, 0, %s31
    %s34 = ssub.s32 %s21, %s33
    %p35 = scmp.eq.s32.totalorder %s34, 0
    %s37 = sadd.s32 %s36, 1
    %s38 = scalar_select %p35, %s36, %s37
    %p41 = pneg %p35
    %p42 = scmp.eq.s32.totalorder %s14, 3
    %p43 = por %p41, %p42
    %p44 = scmp.ne.s32.totalorder %s36, %s39
    %p45 = scmp.eq.s32.totalorder %s14, 0
    %p46 = por %p44, %p45
    %p47 = scmp.ne.s32.totalorder %s36, %s39
    %p48 = scmp.eq.s32.totalorder %s19, 3
    %p49 = por %p47, %p48
    %p50 = scmp.ne.s32.totalorder %s39, %s40
    %p51 = scmp.eq.s32.totalorder %s19, 0
    %p52 = por %p50, %p51
    %p53 = scmp.ne.s32.totalorder %s39, %s40
    %p54 = scmp.eq.s32.totalorder %s20, 3
    %p55 = por %p53, %p54
    %p57 = scmp.ne.s32.totalorder %s40, %s56
    %p58 = scmp.eq.s32.totalorder %s20, 0
    %p59 = por %p57, %p58
    %s60 = ssub.s32 %s21, %s33
    %s61 = ssub.s32 %s22, %s29
    %s62 = sor.u32 %s60, %s61
    %p63 = scmp.eq.s32.totalorder %s62, 0
    %s65 = sadd.s32 %s64, 1
    %s66 = scalar_select %p63, %s64, %s65
    %p69 = pneg %p63
    %p70 = scmp.eq.s32.totalorder %s14, 3
    %p71 = por %p69, %p70
    %p72 = scmp.ne.s32.totalorder %s64, %s67
    %p73 = scmp.eq.s32.totalorder %s14, 0
    %p74 = por %p72, %p73
    %p75 = scmp.ne.s32.totalorder %s64, %s67
    %p76 = scmp.eq.s32.totalorder %s19, 3
    %p77 = por %p75, %p76
    %p78 = scmp.ne.s32.totalorder %s67, %s68
    %p79 = scmp.eq.s32.totalorder %s19, 0
    %p80 = por %p78, %p79
    %p81 = scmp.ne.s32.totalorder %s67, %s68
    %p82 = scmp.eq.s32.totalorder %s20, 3
    %p83 = por %p81, %p82
    %p85 = scmp.ne.s32.totalorder %s68, %s84
    %p86 = scmp.eq.s32.totalorder %s20, 0
    %p87 = por %p85, %p86
    %s88 = ssub.s32 %s21, %s33
    %s89 = ssub.s32 %s22, %s29
    %s90 = sor.u32 %s88, %s89
    %p91 = scmp.eq.s32.totalorder %s90, 0
    %s93 = sadd.s32 %s92, 1
    %s94 = scalar_select %p91, %s92, %s93
    %p97 = pneg %p91
    %p98 = scmp.eq.s32.totalorder %s14, 3
    %p99 = por %p97, %p98
    %p100 = scmp.ne.s32.totalorder %s92, %s95
    %p101 = scmp.eq.s32.totalorder %s14, 0
    %p102 = por %p100, %p101
    %p103 = scmp.ne.s32.totalorder %s92, %s95
    %p104 = scmp.eq.s32.totalorder %s19, 3
    %p105 = por %p103, %p104
    %p106 = scmp.ne.s32.totalorder %s95, %s96
    %p107 = scmp.eq.s32.totalorder %s19, 0
    %p108 = por %p106, %p107
    %p109 = scmp.ne.s32.totalorder %s95, %s96
    %p110 = scmp.eq.s32.totalorder %s20, 3
    %p111 = por %p109, %p110
    %p113 = scmp.ne.s32.totalorder %s96, %s112
    %p114 = scmp.eq.s32.totalorder %s20, 0
    %p115 = por %p113, %p114
    %s117 = sadd.s32 %s116, 1
    %p120 = scmp.eq.s32.totalorder %s14, 3
    %p121 = scmp.ne.s32.totalorder %s116, %s118
    %p122 = scmp.eq.s32.totalorder %s14, 0
    %p123 = por %p121, %p122
    %p124 = scmp.ne.s32.totalorder %s116, %s118
    %p125 = scmp.eq.s32.totalorder %s19, 3
    %p126 = por %p124, %p125
    %p127 = scmp.ne.s32.totalorder %s118, %s119
    %p128 = scmp.eq.s32.totalorder %s19, 0
    %p129 = por %p127, %p128
    %p130 = scmp.ne.s32.totalorder %s118, %s119
    %p131 = scmp.eq.s32.totalorder %s20, 3
    %p132 = por %p130, %p131
    %p134 = scmp.ne.s32.totalorder %s119, %s133
    %p135 = scmp.eq.s32.totalorder %s20, 0
    %p136 = por %p134, %p135
    %s138 = sadd.s32 %s137, 1
    %p141 = scmp.eq.s32.totalorder %s14, 3
    %p142 = scmp.ne.s32.totalorder %s137, %s139
    %p143 = scmp.eq.s32.totalorder %s14, 0
    %p144 = por %p142, %p143
    %p145 = scmp.ne.s32.totalorder %s137, %s139
    %p146 = scmp.eq.s32.totalorder %s19, 3
    %p147 = por %p145, %p146
    %p148 = scmp.ne.s32.totalorder %s139, %s140
    %p149 = scmp.eq.s32.totalorder %s19, 0
    %p150 = por %p148, %p149
    %p151 = scmp.ne.s32.totalorder %s139, %s140
    %p152 = scmp.eq.s32.totalorder %s20, 3
    %p153 = por %p151, %p152
    %p155 = scmp.ne.s32.totalorder %s140, %s154
    %p156 = scmp.eq.s32.totalorder %s20, 0
    %p157 = por %p155, %p156
    %s158 = ssub.s32 %s21, %s33
    %s159 = ssub.s32 %s22, %s29
    %s160 = sor.u32 %s158, %s159
    %p161 = scmp.eq.s32.totalorder %s160, 0
    %s163 = sadd.s32 %s162, 1
    %s164 = scalar_select %p161, %s162, %s163
    %p167 = pneg %p161
    %p168 = scmp.eq.s32.totalorder %s14, 3
    %p169 = por %p167, %p168
    %p170 = scmp.ne.s32.totalorder %s162, %s165
    %p171 = scmp.eq.s32.totalorder %s14, 0
    %p172 = por %p170, %p171
    %p173 = scmp.ne.s32.totalorder %s162, %s165
    %p174 = scmp.eq.s32.totalorder %s19, 3
    %p175 = por %p173, %p174
    %p176 = scmp.ne.s32.totalorder %s165, %s166
    %p177 = scmp.eq.s32.totalorder %s19, 0
    %p178 = por %p176, %p177
    %p179 = scmp.ne.s32.totalorder %s165, %s166
    %p180 = scmp.eq.s32.totalorder %s20, 3
    %p181 = por %p179, %p180
    %p183 = scmp.ne.s32.totalorder %s166, %s182
    %p184 = scmp.eq.s32.totalorder %s20, 0
    %p185 = por %p183, %p184
    %s186 = ssub.s32 %s21, %s33
    %s187 = ssub.s32 %s22, %s29
    %s188 = sor.u32 %s186, %s187
    %p189 = scmp.eq.s32.totalorder %s188, 0
    %s191 = sadd.s32 %s190, 1
    %s192 = scalar_select %p189, %s190, %s191
    %p195 = pneg %p189
    %p196 = scmp.eq.s32.totalorder %s14, 3
    %p197 = por %p195, %p196
    %p198 = scmp.ne.s32.totalorder %s190, %s193
    %p199 = scmp.eq.s32.totalorder %s14, 0
    %p200 = por %p198, %p199
    %p201 = scmp.ne.s32.totalorder %s190, %s193
    %p202 = scmp.eq.s32.totalorder %s19, 3
    %p203 = por %p201, %p202
    %p204 = scmp.ne.s32.totalorder %s193, %s194
    %p205 = scmp.eq.s32.totalorder %s19, 0
    %p206 = por %p204, %p205
    %p207 = scmp.ne.s32.totalorder %s193, %s194
    %p208 = scmp.eq.s32.totalorder %s20, 3
    %p209 = por %p207, %p208
    %p211 = scmp.ne.s32.totalorder %s194, %s210
    %p212 = scmp.eq.s32.totalorder %s20, 0
    %p213 = por %p211, %p212
    %s214 = ssub.s32 %s21, %s33
    %s215 = ssub.s32 %s22, %s29
    %s216 = sor.u32 %s214, %s215
    %p217 = scmp.eq.s32.totalorder %s216, 0
    %s219 = sadd.s32 %s218, 1
    %s220 = scalar_select %p217, %s218, %s219
    %p223 = pneg %p217
    %p224 = scmp.eq.s32.totalorder %s14, 3
    %p225 = por %p223, %p224
    %p226 = scmp.ne.s32.totalorder %s218, %s221
    %p227 = scmp.eq.s32.totalorder %s14, 0
    %p228 = por %p226, %p227
    %p229 = scmp.ne.s32.totalorder %s218, %s221
    %p230 = scmp.eq.s32.totalorder %s19, 3
    %p231 = por %p229, %p230
    %p232 = scmp.ne.s32.totalorder %s221, %s222
    %p233 = scmp.eq.s32.totalorder %s19, 0
    %p234 = por %p232, %p233
    %p235 = scmp.ne.s32.totalorder %s221, %s222
    %p236 = scmp.eq.s32.totalorder %s20, 3
    %p237 = por %p235, %p236
    %p239 = scmp.ne.s32.totalorder %s222, %s238
    %p240 = scmp.eq.s32.totalorder %s20, 0
    %p241 = por %p239, %p240
    %p242 = scmp.le.s32.totalorder 1, %s14
    %p243 = scmp.lt.s32.totalorder %s14, 5
    %p244 = pnand %p242, %p243
    %p245 = pneg %p244
    // Predicated region
    $region9: #{gnn_layer_forward.4} parent=5 // pred_check
      _
    $region10: #{gnn_layer_forward.4} parent=5 // pred_check_branch
      %247 = sbr.rel (%p244) target = $region12
    $region11: #{gnn_layer_forward.4} parent=5 // pred_region
      %s248 = ssub.s32 %s14, 1
      // Predicated region
      $region13: #{gnn_layer_forward.4} parent=11 // pred_check
        %p249 = pneg %p129
      $region14: #{gnn_layer_forward.4} parent=11 // pred_check_branch
        %251 = sbr.rel (%p249) target = $region16
      $region15: #{gnn_layer_forward.4} parent=11 // pred_region
        _
      $region16: #{gnn_layer_forward.4} parent=11 // pred_fallthru
        _
      // Predicated region
      $region17: #{gnn_layer_forward.4} parent=11 // pred_check
        %p252 = pneg %p150
      $region18: #{gnn_layer_forward.4} parent=11 // pred_check_branch
        %254 = sbr.rel (%p252) target = $region20
      $region19: #{gnn_layer_forward.4} parent=11 // pred_region
        _
      $region20: #{gnn_layer_forward.4} parent=11 // pred_fallthru
        _
    $region12: #{gnn_layer_forward.4} parent=5 // pred_fallthru
      _
    %p255 = scmp.lt.s32.totalorder %s14, 4
    // Predicated region
    $region21: #{gnn_layer_forward.4} parent=5 // pred_check
      %p256 = pneg %p255
    $region22: #{gnn_layer_forward.4} parent=5 // pred_check_branch
      %258 = sbr.rel (%p256) target = $region24
    $region23: #{gnn_layer_forward.4} parent=5 // pred_region
      // Predicated region
      $region25: #{gnn_layer_forward.4} parent=23 // pred_check
        %p259 = pneg %p46
      $region26: #{gnn_layer_forward.4} parent=23 // pred_check_branch
        %261 = sbr.rel (%p259) target = $region28
      $region27: #{gnn_layer_forward.4} parent=23 // pred_region
        %p262 = scmp.lt.s32.totalorder %s21, 1
        %s263 = scalar_select %p262, %s21, 1
        %s264 = smul.addr %s263, 2
        %s265 = smul.addr %s264, 8
        %s266 = scalar_lea.vmem %s0, %s265
      $region28: #{gnn_layer_forward.4} parent=23 // pred_fallthru
        _
      // Predicated region
      $region29: #{gnn_layer_forward.4} parent=23 // pred_check
        %p267 = pneg %p74
      $region30: #{gnn_layer_forward.4} parent=23 // pred_check_branch
        %269 = sbr.rel (%p267) target = $region32
      $region31: #{gnn_layer_forward.4} parent=23 // pred_region
        %p270 = scmp.lt.s32.totalorder %s21, 1
        %s271 = scalar_select %p270, %s21, 1
        %p272 = scmp.lt.s32.totalorder %s22, 1
        %s273 = scalar_select %p272, %s22, 1
        %s274 = smul.addr %s271, 2
        %s275 = sadd.s32 %s273, %s274
        %s276 = smul.addr %s275, 8
        %s277 = scalar_lea.vmem %s1, %s276
      $region32: #{gnn_layer_forward.4} parent=23 // pred_fallthru
        _
      // Predicated region
      $region33: #{gnn_layer_forward.4} parent=23 // pred_check
        %p278 = pneg %p102
      $region34: #{gnn_layer_forward.4} parent=23 // pred_check_branch
        %280 = sbr.rel (%p278) target = $region36
      $region35: #{gnn_layer_forward.4} parent=23 // pred_region
        %s281 = smul.u32 16, %s22
        %p282 = scmp.lt.s32.totalorder %s21, 1
        %s283 = scalar_select %p282, %s21, 1
        %p284 = scmp.lt.s32.totalorder %s281, 31
        %s285 = scalar_select %p284, %s281, 31
        %s286 = smul.addr %s283, 32
        %s287 = sadd.s32 %s285, %s286
        %s288 = smul.addr %s287, 8
        %s289 = scalar_lea.vmem %s2, %s288
        %s290 = smul.u32 16, %s22
      $region36: #{gnn_layer_forward.4} parent=23 // pred_fallthru
        _
    $region24: #{gnn_layer_forward.4} parent=5 // pred_fallthru
      _
    %p291 = scmp.le.s32.totalorder 1, %s14
    %p292 = scmp.lt.s32.totalorder %s14, 5
    %p293 = pnand %p291, %p292
    %p294 = pneg %p293
    // Predicated region
    $region37: #{gnn_layer_forward.4} parent=5 // pred_check
      _
    $region38: #{gnn_layer_forward.4} parent=5 // pred_check_branch
      %296 = sbr.rel (%p293) target = $region40
    $region39: #{gnn_layer_forward.4} parent=5 // pred_region
      %s297 = ssub.s32 %s14, 1
      %p298 = scmp.lt.s32.totalorder %s23, 1
      %s299 = scalar_select %p298, %s23, 1
      %s300 = smul.addr %s299, 2
      %s301 = smul.addr %s300, 8
      %s302 = scalar_lea.vmem %s0, %s301
      %p303 = pneg %p52
      %p304 = pneg %p49
      %p305 = scmp.lt.s32.totalorder %s23, 1
      %s306 = scalar_select %p305, %s23, 1
      %p307 = scmp.lt.s32.totalorder %s24, 1
      %s308 = scalar_select %p307, %s24, 1
      %s309 = smul.addr %s306, 2
      %s310 = sadd.s32 %s308, %s309
      %s311 = smul.addr %s310, 8
      %s312 = scalar_lea.vmem %s1, %s311
      %p313 = pneg %p80
      %p314 = pneg %p77
      %s315 = smul.u32 16, %s24
      %p316 = scmp.lt.s32.totalorder %s23, 1
      %s317 = scalar_select %p316, %s23, 1
      %p318 = scmp.lt.s32.totalorder %s315, 31
      %s319 = scalar_select %p318, %s315, 31
      %s320 = smul.addr %s317, 32
      %s321 = sadd.s32 %s319, %s320
      %s322 = smul.addr %s321, 8
      %s323 = scalar_lea.vmem %s2, %s322
      %p324 = pneg %p108
      %p325 = pneg %p105
      %p326 = pneg %p129
      %p327 = pneg %p126
      %p328 = pneg %p150
      %p329 = pneg %p147
      %p330 = pneg %p178
      %p331 = pneg %p175
      %p332 = scmp.lt.s32.totalorder %s23, 1
      %s333 = scalar_select %p332, %s23, 1
      %p334 = scmp.lt.s32.totalorder %s24, 1
      %s335 = scalar_select %p334, %s24, 1
      %s336 = smul.addr %s333, 2
      %s337 = sadd.s32 %s335, %s336
      %s338 = smul.addr %s337, 8
      %s339 = scalar_lea.vmem %s5, %s338
      %p340 = pneg %p206
      %p341 = pneg %p203
      %p342 = scmp.lt.s32.totalorder %s23, 1
      %s343 = scalar_select %p342, %s23, 1
      %p344 = scmp.lt.s32.totalorder %s24, 1
      %s345 = scalar_select %p344, %s24, 1
      %s346 = smul.addr %s343, 2
      %s347 = sadd.s32 %s345, %s346
      %s348 = smul.addr %s347, 2
      %s349 = scalar_lea.vmem %s6, %s348
      %p350 = pneg %p234
      %p351 = pneg %p231
      %p352 = scmp.lt.s32.totalorder %s23, 1
      %s353 = scalar_select %p352, %s23, 1
      %p354 = scmp.lt.s32.totalorder %s24, 1
      %s355 = scalar_select %p354, %s24, 1
      %s356 = smul.addr %s353, 2
      %s357 = sadd.s32 %s355, %s356
      %s358 = smul.addr %s357, 2
      %s359 = scalar_lea.vmem %s7, %s358
      %p360 = scmp.lt.s32.totalorder %s23, 1
      %s361 = scalar_select %p360, %s23, 1
      %s362 = smul.addr %s361, 2
      %s363 = smul.addr %s362, 8
      %s364 = scalar_lea.vmem %s0, %s363
      %p365 = scmp.lt.s32.totalorder %s23, 1
      %s366 = scalar_select %p365, %s23, 1
      %p367 = scmp.lt.s32.totalorder %s24, 1
      %s368 = scalar_select %p367, %s24, 1
      %s369 = smul.addr %s366, 2
      %s370 = sadd.s32 %s368, %s369
      %s371 = smul.addr %s370, 8
      %s372 = scalar_lea.vmem %s1, %s371
      %s373 = smul.u32 16, %s24
      %p374 = scmp.lt.s32.totalorder %s23, 1
      %s375 = scalar_select %p374, %s23, 1
      %p376 = scmp.lt.s32.totalorder %s373, 31
      %s377 = scalar_select %p376, %s373, 31
      %s378 = smul.addr %s375, 32
      %s379 = sadd.s32 %s377, %s378
      %s380 = smul.addr %s379, 8
      %s381 = scalar_lea.vmem %s2, %s380
      %s382 = smul.u32 16, %s24
      %p383 = scmp.lt.s32.totalorder %s23, 1
      %s384 = scalar_select %p383, %s23, 1
      %p385 = scmp.lt.s32.totalorder %s24, 1
      %s386 = scalar_select %p385, %s24, 1
      %s387 = smul.addr %s384, 2
      %s388 = sadd.s32 %s386, %s387
      %s389 = smul.addr %s388, 8
      %s390 = scalar_lea.vmem %s5, %s389
      %p391 = scmp.lt.s32.totalorder %s23, 1
      %s392 = scalar_select %p391, %s23, 1
      %p393 = scmp.lt.s32.totalorder %s24, 1
      %s394 = scalar_select %p393, %s24, 1
      %s395 = smul.addr %s392, 2
      %s396 = sadd.s32 %s394, %s395
      %s397 = smul.addr %s396, 2
      %s398 = scalar_lea.vmem %s6, %s397
      %p399 = scmp.lt.s32.totalorder %s23, 1
      %s400 = scalar_select %p399, %s23, 1
      %p401 = scmp.lt.s32.totalorder %s24, 1
      %s402 = scalar_select %p401, %s24, 1
      %s403 = smul.addr %s400, 2
      %s404 = sadd.s32 %s402, %s403
      %s405 = smul.addr %s404, 2
      %s406 = scalar_lea.vmem %s7, %s405
      %v407 = vld [vmem:[%s364] sm:$0xff]
      %v408 = vld [vmem:[%s364 + $0x8] sm:$0xff]
      %v409 = vld [vmem:[%s372] sm:$0xff]
      %v410 = vld [vmem:[%s381] sm:$0xff]
      %v411 = vld [vmem:[%s381 + $0x8] sm:$0xff]
      %v412 = vld [vmem:[%s381 + $0x10] sm:$0xff]
      %v413 = vld [vmem:[%s381 + $0x18] sm:$0xff]
      %v414 = vld [vmem:[%s381 + $0x20] sm:$0xff]
      %v415 = vld [vmem:[%s381 + $0x28] sm:$0xff]
      %v416 = vld [vmem:[%s381 + $0x30] sm:$0xff]
      %v417 = vld [vmem:[%s381 + $0x38] sm:$0xff]
      %v418 = vld [vmem:[%s381 + $0x40] sm:$0xff]
      %v419 = vld [vmem:[%s381 + $0x48] sm:$0xff]
      %v420 = vld [vmem:[%s381 + $0x50] sm:$0xff]
      %v421 = vld [vmem:[%s381 + $0x58] sm:$0xff]
      %v422 = vld [vmem:[%s381 + $0x60] sm:$0xff]
      %v423 = vld [vmem:[%s381 + $0x68] sm:$0xff]
      %v424 = vld [vmem:[%s381 + $0x70] sm:$0xff]
      %v425 = vld [vmem:[%s381 + $0x78] sm:$0xff]
      %v426 = vld [vmem:[%s3] sm:$0xff]
      %v427 = vld [vmem:[%s3 + $0x8] sm:$0xff]
      %v428 = vld [vmem:[%s3 + $0x10] sm:$0xff]
      %v429 = vld [vmem:[%s3 + $0x18] sm:$0xff]
      %v430 = vld [vmem:[%s4] sm:$0x1]
      %v432 = vlaneseq
      %v433 = vshrl.u32 %v432, 7
      %v434 = vsub.s32 0, %v433
      %v435 = vrot.slane %v430, %v434
      %vm437 = vcmask 261120
      %v439 = vsel %vm437, %v410, 0
      %v442 = vsel %vm437, %v411, 0
      %v445 = vsel %vm437, %v412, 0
      %v448 = vsel %vm437, %v413, 0
      %v451 = vsel %vm437, %v414, 0
      %v454 = vsel %vm437, %v415, 0
      %v457 = vsel %vm437, %v416, 0
      %v460 = vsel %vm437, %v417, 0
      %v463 = vsel %vm437, %v418, 0
      %v466 = vsel %vm437, %v419, 0
      %v469 = vsel %vm437, %v420, 0
      %v472 = vsel %vm437, %v421, 0
      %v475 = vsel %vm437, %v422, 0
      %v478 = vsel %vm437, %v423, 0
      %v481 = vsel %vm437, %v424, 0
      %v484 = vsel %vm437, %v425, 0
      %486 = vmatprep.subr.mxu0 0.0
      %487 = vmatpush1.msra.mxu0 %v426
      %488 = vmatprep.subr.mxu0 0.0
      %489 = vmatpush1.msra.mxu0 %v427
      %490 = vmatprep.subr.mxu0 0.0
      %491 = vmatpush1.msra.mxu0 %v428
      %492 = vmatprep.subr.mxu0 0.0
      %493 = vmatpush1.msra.mxu0 %v429
      %494 = vmatprep.subr.mxu0 0.0
      %495 = vmatpush1.msra.mxu0 0.0
      %496 = vmatprep.subr.mxu0 0.0
      %497 = vmatpush1.msra.mxu0 0.0
      %498 = vmatprep.subr.mxu0 0.0
      %499 = vmatpush1.msra.mxu0 0.0
      %500 = vmatprep.subr.mxu0 0.0
      %501 = vmatpush1.msra.mxu0 0.0
      %502 = vmatprep.subr.mxu0 0.0
      %503 = vmatpush1.msra.mxu0 0.0
      %504 = vmatprep.subr.mxu0 0.0
      %505 = vmatpush1.msra.mxu0 0.0
      %506 = vmatprep.subr.mxu0 0.0
      %507 = vmatpush1.msra.mxu0 0.0
      %508 = vmatprep.subr.mxu0 0.0
      %509 = vmatpush1.msra.mxu0 0.0
      %510 = vmatprep.subr.mxu0 0.0
      %511 = vmatpush1.msra.mxu0 0.0
      %512 = vmatprep.subr.mxu0 0.0
      %513 = vmatpush1.msra.mxu0 0.0
      %514 = vmatprep.subr.mxu0 0.0
      %515 = vmatpush1.msra.mxu0 0.0
      %516 = vmatprep.subr.mxu0 0.0
      %517 = vmatpush1.msra.mxu0 0.0
      %518 = vmatprep.subr.mxu0 0.0
      %519 = vmatpush1.msra.mxu0 0.0
      %520 = vmatprep.subr.mxu0 0.0
      %521 = vmatpush1.msra.mxu0 0.0
      %522 = vmatprep.subr.mxu0 0.0
      %523 = vmatpush1.msra.mxu0 0.0
      %524 = vmatprep.subr.mxu0 0.0
      %525 = vmatpush1.msra.mxu0 0.0
      %526 = vmatprep.subr.mxu0 0.0
      %527 = vmatpush1.msra.mxu0 0.0
      %528 = vmatprep.subr.mxu0 0.0
      %529 = vmatpush1.msra.mxu0 0.0
      %530 = vmatprep.subr.mxu0 0.0
      %531 = vmatpush1.msra.mxu0 0.0
      %532 = vmatprep.subr.mxu0 0.0
      %533 = vmatpush1.msra.mxu0 0.0
      %534 = vmatprep.subr.mxu0 0.0
      %535 = vmatpush1.msra.mxu0 0.0
      %536 = vmatprep.subr.mxu0 0.0
      %537 = vmatpush1.msra.mxu0 0.0
      %538 = vmatprep.subr.mxu0 0.0
      %539 = vmatpush1.msra.mxu0 0.0
      %540 = vmatprep.subr.mxu0 0.0
      %541 = vmatpush1.msra.mxu0 0.0
      %542 = vmatprep.subr.mxu0 0.0
      %543 = vmatpush1.msra.mxu0 0.0
      %544 = vmatprep.subr.mxu0 0.0
      %545 = vmatpush1.msra.mxu0 0.0
      %546 = vmatprep.subr.mxu0 0.0
      %547 = vmatpush1.msra.mxu0 0.0
      %548 = vmatprep.subr.mxu0 0.0
      %549 = vmatpush1.msra.mxu0 0.0
      %550 = vmatprep.mubr.f32.mxu0 0.0
      %551 = vmatmul.mubr.f32.gmra.mrb[0].mxu0 %v439
      %v552 = vpop.f32.mrb[0].mxu0
      %v553 = vadd.f32 %v435, %v552
      %v554 = vpop.f32.mrb[0].mxu0
      %555 = vmatprep.mubr.f32.mxu0 0.0
      %556 = vmatmul.mubr.f32.gmra.mrb[0].mxu0 %v442
      %v557 = vpop.f32.mrb[0].mxu0
      %v558 = vadd.f32 %v435, %v557
      %v559 = vpop.f32.mrb[0].mxu0
      %560 = vmatprep.mubr.f32.mxu0 0.0
      %561 = vmatmul.mubr.f32.gmra.mrb[0].mxu0 %v445
      %v562 = vpop.f32.mrb[0].mxu0
      %v563 = vadd.f32 %v435, %v562
      %v564 = vpop.f32.mrb[0].mxu0
      %565 = vmatprep.mubr.f32.mxu0 0.0
      %566 = vmatmul.mubr.f32.gmra.mrb[0].mxu0 %v448
      %v567 = vpop.f32.mrb[0].mxu0
      %v568 = vadd.f32 %v435, %v567
      %v569 = vpop.f32.mrb[0].mxu0
      %570 = vmatprep.mubr.f32.mxu0 0.0
      %571 = vmatmul.mubr.f32.gmra.mrb[0].mxu0 %v451
      %v572 = vpop.f32.mrb[0].mxu0
      %v573 = vadd.f32 %v435, %v572
      %v574 = vpop.f32.mrb[0].mxu0
      %575 = vmatprep.mubr.f32.mxu0 0.0
      %576 = vmatmul.mubr.f32.gmra.mrb[0].mxu0 %v454
      %v577 = vpop.f32.mrb[0].mxu0
      %v578 = vadd.f32 %v435, %v577
      %v579 = vpop.f32.mrb[0].mxu0
      %580 = vmatprep.mubr.f32.mxu0 0.0
      %581 = vmatmul.mubr.f32.gmra.mrb[0].mxu0 %v457
      %v582 = vpop.f32.mrb[0].mxu0
      %v583 = vadd.f32 %v435, %v582
      %v584 = vpop.f32.mrb[0].mxu0
      %585 = vmatprep.mubr.f32.mxu0 0.0
      %586 = vmatmul.mubr.f32.gmra.mrb[0].mxu0 %v460
      %v587 = vpop.f32.mrb[0].mxu0
      %v588 = vadd.f32 %v435, %v587
      %v589 = vpop.f32.mrb[0].mxu0
      %590 = vmatprep.mubr.f32.mxu0 0.0
      %591 = vmatmul.mubr.f32.gmra.mrb[0].mxu0 %v463
      %v592 = vpop.f32.mrb[0].mxu0
      %v593 = vadd.f32 %v435, %v592
      %v594 = vpop.f32.mrb[0].mxu0
      %595 = vmatprep.mubr.f32.mxu0 0.0
      %596 = vmatmul.mubr.f32.gmra.mrb[0].mxu0 %v466
      %v597 = vpop.f32.mrb[0].mxu0
      %v598 = vadd.f32 %v435, %v597
      %v599 = vpop.f32.mrb[0].mxu0
      %600 = vmatprep.mubr.f32.mxu0 0.0
      %601 = vmatmul.mubr.f32.gmra.mrb[0].mxu0 %v469
      %v602 = vpop.f32.mrb[0].mxu0
      %v603 = vadd.f32 %v435, %v602
      %v604 = vpop.f32.mrb[0].mxu0
      %605 = vmatprep.mubr.f32.mxu0 0.0
      %606 = vmatmul.mubr.f32.gmra.mrb[0].mxu0 %v472
      %v607 = vpop.f32.mrb[0].mxu0
      %v608 = vadd.f32 %v435, %v607
      %v609 = vpop.f32.mrb[0].mxu0
      %610 = vmatprep.mubr.f32.mxu0 0.0
      %611 = vmatmul.mubr.f32.gmra.mrb[0].mxu0 %v475
      %v612 = vpop.f32.mrb[0].mxu0
      %v613 = vadd.f32 %v435, %v612
      %v614 = vpop.f32.mrb[0].mxu0
      %615 = vmatprep.mubr.f32.mxu0 0.0
      %616 = vmatmul.mubr.f32.gmra.mrb[0].mxu0 %v478
      %v617 = vpop.f32.mrb[0].mxu0
      %v618 = vadd.f32 %v435, %v617
      %v619 = vpop.f32.mrb[0].mxu0
      %620 = vmatprep.mubr.f32.mxu0 0.0
      %621 = vmatmul.mubr.f32.gmra.mrb[0].mxu0 %v481
      %v622 = vpop.f32.mrb[0].mxu0
      %v623 = vadd.f32 %v435, %v622
      %v624 = vpop.f32.mrb[0].mxu0
      %625 = vmatprep.mubr.f32.mxu0 0.0
      %626 = vmatmul.mubr.f32.gmra.mrb[0].mxu0 %v484
      %v627 = vpop.f32.mrb[0].mxu0
      %v628 = vadd.f32 %v435, %v627
      %v629 = vpop.f32.mrb[0].mxu0
      %630 = vdwg.mxu0
      %633 = vrot.lane.b32.xlu0 %v407, 96
      %v634 = vpop.permute.xlu0 %633
      %635 = vrot.lane.b32.xlu0 %v408, 96
      %v636 = vpop.permute.xlu0 %635
      %v639 = vadd.f32 %v553, %v634
      %v640 = vadd.f32 %v558, %v636
      %v641 = vadd.f32 %v563, %v634
      %v642 = vadd.f32 %v568, %v636
      %v643 = vadd.f32 %v573, %v634
      %v644 = vadd.f32 %v578, %v636
      %v645 = vadd.f32 %v583, %v634
      %v646 = vadd.f32 %v588, %v636
      %v647 = vadd.f32 %v593, %v634
      %v648 = vadd.f32 %v598, %v636
      %v649 = vadd.f32 %v603, %v634
      %v650 = vadd.f32 %v608, %v636
      %v651 = vadd.f32 %v613, %v634
      %v652 = vadd.f32 %v618, %v636
      %v653 = vadd.f32 %v623, %v634
      %v654 = vadd.f32 %v628, %v636
      %v656 = vcombine.high %v409, %v409
      %v658 = vunpack.c.l.s4 1966171168
      %v659 = vunpack.c.0.s8 %v658
      %v660 = vlaneseq
      %v661 = vshrl.u32 %v660, 7
      %v662 = vsub.s32 %v659, %v661
      %v663 = vrot.slane %v409, %v662
      %v665 = vunpack.c.l.s4 1966171168
      %v666 = vunpack.c.0.s8 %v665
      %v667 = vlaneseq
      %v668 = vshrl.u32 %v667, 7
      %v669 = vsub.s32 %v666, %v668
      %v670 = vrot.slane %v656, %v669
      %v671 = vcombine.high %v663, %v663
      %v672 = vcombine.high %v670, %v670
      %v674 = vunpack.c.l.s4 1966171168
      %v675 = vunpack.c.0.s8 %v674
      %v676 = vlaneseq
      %v677 = vshrl.u32 %v676, 7
      %v678 = vsub.s32 %v675, %v677
      %v679 = vrot.slane %v663, %v678
      %v681 = vunpack.c.l.s4 1966171168
      %v682 = vunpack.c.0.s8 %v681
      %v683 = vlaneseq
      %v684 = vshrl.u32 %v683, 7
      %v685 = vsub.s32 %v682, %v684
      %v686 = vrot.slane %v670, %v685
      %v688 = vunpack.c.l.s4 1966171168
      %v689 = vunpack.c.0.s8 %v688
      %v690 = vlaneseq
      %v691 = vshrl.u32 %v690, 7
      %v692 = vsub.s32 %v689, %v691
      %v693 = vrot.slane %v671, %v692
      %v695 = vunpack.c.l.s4 1966171168
      %v696 = vunpack.c.0.s8 %v695
      %v697 = vlaneseq
      %v698 = vshrl.u32 %v697, 7
      %v699 = vsub.s32 %v696, %v698
      %v700 = vrot.slane %v672, %v699
      %v701 = vcombine.high %v679, %v679
      %v702 = vcombine.high %v686, %v686
      %v703 = vcombine.high %v693, %v693
      %v704 = vcombine.high %v700, %v700
      %v705 = vlaneseq
      %v706 = vshrl.u32 %v705, 7
      %v707 = vsub.s32 0, %v706
      %v708 = vrot.slane %v679, %v707
      %v709 = vlaneseq
      %v710 = vshrl.u32 %v709, 7
      %v711 = vsub.s32 0, %v710
      %v712 = vrot.slane %v693, %v711
      %v713 = vlaneseq
      %v714 = vshrl.u32 %v713, 7
      %v715 = vsub.s32 0, %v714
      %v716 = vrot.slane %v701, %v715
      %v717 = vlaneseq
      %v718 = vshrl.u32 %v717, 7
      %v719 = vsub.s32 0, %v718
      %v720 = vrot.slane %v703, %v719
      %v721 = vlaneseq
      %v722 = vshrl.u32 %v721, 7
      %v723 = vsub.s32 0, %v722
      %v724 = vrot.slane %v686, %v723
      %v725 = vlaneseq
      %v726 = vshrl.u32 %v725, 7
      %v727 = vsub.s32 0, %v726
      %v728 = vrot.slane %v700, %v727
      %v729 = vlaneseq
      %v730 = vshrl.u32 %v729, 7
      %v731 = vsub.s32 0, %v730
      %v732 = vrot.slane %v702, %v731
      %v733 = vlaneseq
      %v734 = vshrl.u32 %v733, 7
      %v735 = vsub.s32 0, %v734
      %v736 = vrot.slane %v704, %v735
      %737 = vrot.lane.b32.xlu0 %v708, 96
      %v738 = vpop.permute.xlu0 %737
      %739 = vrot.lane.b32.xlu0 %v712, 96
      %v740 = vpop.permute.xlu0 %739
      %741 = vrot.lane.b32.xlu0 %v716, 96
      %v742 = vpop.permute.xlu0 %741
      %743 = vrot.lane.b32.xlu0 %v720, 96
      %v744 = vpop.permute.xlu0 %743
      %745 = vrot.lane.b32.xlu0 %v724, 96
      %v746 = vpop.permute.xlu0 %745
      %747 = vrot.lane.b32.xlu0 %v728, 96
      %v748 = vpop.permute.xlu0 %747
      %749 = vrot.lane.b32.xlu0 %v732, 96
      %v750 = vpop.permute.xlu0 %749
      %751 = vrot.lane.b32.xlu0 %v736, 96
      %v752 = vpop.permute.xlu0 %751
      %v761 = vadd.f32 %v639, %v738
      %v762 = vadd.f32 %v640, %v738
      %v763 = vadd.f32 %v641, %v740
      %v764 = vadd.f32 %v642, %v740
      %v765 = vadd.f32 %v643, %v742
      %v766 = vadd.f32 %v644, %v742
      %v767 = vadd.f32 %v645, %v744
      %v768 = vadd.f32 %v646, %v744
      %v769 = vadd.f32 %v647, %v746
      %v770 = vadd.f32 %v648, %v746
      %v771 = vadd.f32 %v649, %v748
      %v772 = vadd.f32 %v650, %v748
      %v773 = vadd.f32 %v651, %v750
      %v774 = vadd.f32 %v652, %v750
      %v775 = vadd.f32 %v653, %v752
      %v776 = vadd.f32 %v654, %v752
      %v777 = vxor.u32 %v761, 2147483648
      %v778 = vxor.u32 %v762, 2147483648
      %v779 = vxor.u32 %v763, 2147483648
      %v780 = vxor.u32 %v764, 2147483648
      %v781 = vxor.u32 %v765, 2147483648
      %v782 = vxor.u32 %v766, 2147483648
      %v783 = vxor.u32 %v767, 2147483648
      %v784 = vxor.u32 %v768, 2147483648
      %v785 = vxor.u32 %v769, 2147483648
      %v786 = vxor.u32 %v770, 2147483648
      %v787 = vxor.u32 %v771, 2147483648
      %v788 = vxor.u32 %v772, 2147483648
      %v789 = vxor.u32 %v773, 2147483648
      %v790 = vxor.u32 %v774, 2147483648
      %v791 = vxor.u32 %v775, 2147483648
      %v792 = vxor.u32 %v776, 2147483648
      %v793 = vmul.f32 %v777, 1.442695
      %v794 = vpow.pop %v793
      %v795 = vmul.f32 %v778, 1.442695
      %v796 = vpow.pop %v795
      %v797 = vmul.f32 %v779, 1.442695
      %v798 = vpow.pop %v797
      %v799 = vmul.f32 %v780, 1.442695
      %v800 = vpow.pop %v799
      %v801 = vmul.f32 %v781, 1.442695
      %v802 = vpow.pop %v801
      %v803 = vmul.f32 %v782, 1.442695
      %v804 = vpow.pop %v803
      %v805 = vmul.f32 %v783, 1.442695
      %v806 = vpow.pop %v805
      %v807 = vmul.f32 %v784, 1.442695
      %v808 = vpow.pop %v807
      %v809 = vmul.f32 %v785, 1.442695
      %v810 = vpow.pop %v809
      %v811 = vmul.f32 %v786, 1.442695
      %v812 = vpow.pop %v811
      %v813 = vmul.f32 %v787, 1.442695
      %v814 = vpow.pop %v813
      %v815 = vmul.f32 %v788, 1.442695
      %v816 = vpow.pop %v815
      %v817 = vmul.f32 %v789, 1.442695
      %v818 = vpow.pop %v817
      %v819 = vmul.f32 %v790, 1.442695
      %v820 = vpow.pop %v819
      %v821 = vmul.f32 %v791, 1.442695
      %v822 = vpow.pop %v821
      %v823 = vmul.f32 %v792, 1.442695
      %v824 = vpow.pop %v823
      %v825 = vadd.f32 %v794, 1.0
      %v826 = vadd.f32 %v796, 1.0
      %v827 = vadd.f32 %v798, 1.0
      %v828 = vadd.f32 %v800, 1.0
      %v829 = vadd.f32 %v802, 1.0
      %v830 = vadd.f32 %v804, 1.0
      %v831 = vadd.f32 %v806, 1.0
      %v832 = vadd.f32 %v808, 1.0
      %v833 = vadd.f32 %v810, 1.0
      %v834 = vadd.f32 %v812, 1.0
      %v835 = vadd.f32 %v814, 1.0
      %v836 = vadd.f32 %v816, 1.0
      %v837 = vadd.f32 %v818, 1.0
      %v838 = vadd.f32 %v820, 1.0
      %v839 = vadd.f32 %v822, 1.0
      %v840 = vadd.f32 %v824, 1.0
      %v841 = vrcp.pop %v825
      %v842 = vmul.f32 1.0, %v841
      %v843 = vrcp.pop %v826
      %v844 = vmul.f32 1.0, %v843
      %v845 = vrcp.pop %v827
      %v846 = vmul.f32 1.0, %v845
      %v847 = vrcp.pop %v828
      %v848 = vmul.f32 1.0, %v847
      %v849 = vrcp.pop %v829
      %v850 = vmul.f32 1.0, %v849
      %v851 = vrcp.pop %v830
      %v852 = vmul.f32 1.0, %v851
      %v853 = vrcp.pop %v831
      %v854 = vmul.f32 1.0, %v853
      %v855 = vrcp.pop %v832
      %v856 = vmul.f32 1.0, %v855
      %v857 = vrcp.pop %v833
      %v858 = vmul.f32 1.0, %v857
      %v859 = vrcp.pop %v834
      %v860 = vmul.f32 1.0, %v859
      %v861 = vrcp.pop %v835
      %v862 = vmul.f32 1.0, %v861
      %v863 = vrcp.pop %v836
      %v864 = vmul.f32 1.0, %v863
      %v865 = vrcp.pop %v837
      %v866 = vmul.f32 1.0, %v865
      %v867 = vrcp.pop %v838
      %v868 = vmul.f32 1.0, %v867
      %v869 = vrcp.pop %v839
      %v870 = vmul.f32 1.0, %v869
      %v871 = vrcp.pop %v840
      %v872 = vmul.f32 1.0, %v871
      %v873 = vmul.f32 %v842, %v407
      %v874 = vmul.f32 %v844, %v408
      %v875 = vmul.f32 %v846, %v407
      %v876 = vmul.f32 %v848, %v408
      %v877 = vmul.f32 %v850, %v407
      %v878 = vmul.f32 %v852, %v408
      %v879 = vmul.f32 %v854, %v407
      %v880 = vmul.f32 %v856, %v408
      %v881 = vmul.f32 %v858, %v407
      %v882 = vmul.f32 %v860, %v408
      %v883 = vmul.f32 %v862, %v407
      %v884 = vmul.f32 %v864, %v408
      %v885 = vmul.f32 %v866, %v407
      %v886 = vmul.f32 %v868, %v408
      %v887 = vmul.f32 %v870, %v407
      %v888 = vmul.f32 %v872, %v408
      %v889 = vsel %vm437, %v873, 0.0
      %v890 = vsel %vm437, %v874, 0.0
      %v891 = vadd.f32 %v889, %v890
      %v892 = vrot.slane %v891, 4
      %v893 = vadd.f32 %v891, %v892
      %v894 = vrot.slane %v893, 2
      %v895 = vadd.f32 %v893, %v894
      %v896 = vrot.slane %v895, 1
      %v897 = vadd.f32 %v895, %v896
      %v898 = vsel %vm437, %v875, 0.0
      %v899 = vsel %vm437, %v876, 0.0
      %v900 = vadd.f32 %v898, %v899
      %v901 = vrot.slane %v900, 4
      %v902 = vadd.f32 %v900, %v901
      %v903 = vrot.slane %v902, 2
      %v904 = vadd.f32 %v902, %v903
      %v905 = vrot.slane %v904, 1
      %v906 = vadd.f32 %v904, %v905
      %v907 = vsel %vm437, %v877, 0.0
      %v908 = vsel %vm437, %v878, 0.0
      %v909 = vadd.f32 %v907, %v908
      %v910 = vrot.slane %v909, 4
      %v911 = vadd.f32 %v909, %v910
      %v912 = vrot.slane %v911, 2
      %v913 = vadd.f32 %v911, %v912
      %v914 = vrot.slane %v913, 1
      %v915 = vadd.f32 %v913, %v914
      %v916 = vsel %vm437, %v879, 0.0
      %v917 = vsel %vm437, %v880, 0.0
      %v918 = vadd.f32 %v916, %v917
      %v919 = vrot.slane %v918, 4
      %v920 = vadd.f32 %v918, %v919
      %v921 = vrot.slane %v920, 2
      %v922 = vadd.f32 %v920, %v921
      %v923 = vrot.slane %v922, 1
      %v924 = vadd.f32 %v922, %v923
      %v925 = vsel %vm437, %v881, 0.0
      %v926 = vsel %vm437, %v882, 0.0
      %v927 = vadd.f32 %v925, %v926
      %v928 = vrot.slane %v927, 4
      %v929 = vadd.f32 %v927, %v928
      %v930 = vrot.slane %v929, 2
      %v931 = vadd.f32 %v929, %v930
      %v932 = vrot.slane %v931, 1
      %v933 = vadd.f32 %v931, %v932
      %v934 = vsel %vm437, %v883, 0.0
      %v935 = vsel %vm437, %v884, 0.0
      %v936 = vadd.f32 %v934, %v935
      %v937 = vrot.slane %v936, 4
      %v938 = vadd.f32 %v936, %v937
      %v939 = vrot.slane %v938, 2
      %v940 = vadd.f32 %v938, %v939
      %v941 = vrot.slane %v940, 1
      %v942 = vadd.f32 %v940, %v941
      %v943 = vsel %vm437, %v885, 0.0
      %v944 = vsel %vm437, %v886, 0.0
      %v945 = vadd.f32 %v943, %v944
      %v946 = vrot.slane %v945, 4
      %v947 = vadd.f32 %v945, %v946
      %v948 = vrot.slane %v947, 2
      %v949 = vadd.f32 %v947, %v948
      %v950 = vrot.slane %v949, 1
      %v951 = vadd.f32 %v949, %v950
      %v952 = vsel %vm437, %v887, 0.0
      %v953 = vsel %vm437, %v888, 0.0
      %v954 = vadd.f32 %v952, %v953
      %v955 = vrot.slane %v954, 4
      %v956 = vadd.f32 %v954, %v955
      %v957 = vrot.slane %v956, 2
      %v958 = vadd.f32 %v956, %v957
      %v959 = vrot.slane %v958, 1
      %v960 = vadd.f32 %v958, %v959
      %vm969 = vcmask 1041409
      %v970 = vsel %vm969, %v906, %v897
      %vm971 = vcmask 1042434
      %v972 = vsel %vm971, %v915, %v970
      %vm973 = vcmask 1043459
      %v974 = vsel %vm973, %v924, %v972
      %vm975 = vcmask 1044484
      %v976 = vsel %vm975, %v933, %v974
      %vm977 = vcmask 1045509
      %v978 = vsel %vm977, %v942, %v976
      %vm979 = vcmask 1046534
      %v980 = vsel %vm979, %v951, %v978
      %vm981 = vcmask 1047559
      %v982 = vsel %vm981, %v960, %v980
      %v984 = vadd.f32 %v409, %v982
      %985 = vst.msk [vmem:[%s390] sm:$0xff] %vm437, %v984
      %v986 = vsel %vm437, %v984, 0.0
      %v987 = vrot.slane %v986, 4
      %v988 = vadd.f32 %v986, %v987
      %v989 = vrot.slane %v988, 2
      %v990 = vadd.f32 %v988, %v989
      %v991 = vrot.slane %v990, 1
      %v992 = vadd.f32 %v990, %v991
      %v993 = vmul.f32 %v984, %v984
      %v994 = vsel %vm437, %v993, 0.0
      %v995 = vrot.slane %v994, 4
      %v996 = vadd.f32 %v994, %v995
      %v997 = vrot.slane %v996, 2
      %v998 = vadd.f32 %v996, %v997
      %v999 = vrot.slane %v998, 1
      %v1000 = vadd.f32 %v998, %v999
      %vm1001 = vcmask 1040384
      %v1002 = vsel %vm1001, %v992, %v1000
      %vm1003 = vcmask 254976
      %1004 = vst.msk [vmem:[%s398] sm:$0x3] %vm1003, %v1002
      %v1005 = vsel %vm437, %v761, 0.0
      %v1006 = vsel %vm437, %v762, 0.0
      %v1007 = vadd.f32 %v1005, %v1006
      %v1008 = vsel %vm437, %v763, 0.0
      %v1009 = vadd.f32 %v1007, %v1008
      %v1010 = vsel %vm437, %v764, 0.0
      %v1011 = vadd.f32 %v1009, %v1010
      %v1012 = vsel %vm437, %v765, 0.0
      %v1013 = vadd.f32 %v1011, %v1012
      %v1014 = vsel %vm437, %v766, 0.0
      %v1015 = vadd.f32 %v1013, %v1014
      %v1016 = vsel %vm437, %v767, 0.0
      %v1017 = vadd.f32 %v1015, %v1016
      %v1018 = vsel %vm437, %v768, 0.0
      %v1019 = vadd.f32 %v1017, %v1018
      %v1020 = vsel %vm437, %v769, 0.0
      %v1021 = vadd.f32 %v1019, %v1020
      %v1022 = vsel %vm437, %v770, 0.0
      %v1023 = vadd.f32 %v1021, %v1022
      %v1024 = vsel %vm437, %v771, 0.0
      %v1025 = vadd.f32 %v1023, %v1024
      %v1026 = vsel %vm437, %v772, 0.0
      %v1027 = vadd.f32 %v1025, %v1026
      %v1028 = vsel %vm437, %v773, 0.0
      %v1029 = vadd.f32 %v1027, %v1028
      %v1030 = vsel %vm437, %v774, 0.0
      %v1031 = vadd.f32 %v1029, %v1030
      %v1032 = vsel %vm437, %v775, 0.0
      %v1033 = vadd.f32 %v1031, %v1032
      %v1034 = vsel %vm437, %v776, 0.0
      %v1035 = vadd.f32 %v1033, %v1034
      %v1036 = vrot.slane %v1035, 4
      %v1037 = vadd.f32 %v1035, %v1036
      %v1038 = vrot.slane %v1037, 2
      %v1039 = vadd.f32 %v1037, %v1038
      %v1040 = vrot.slane %v1039, 1
      %v1041 = vadd.f32 %v1039, %v1040
      %v1042 = vmul.f32 %v761, %v761
      %v1043 = vmul.f32 %v762, %v762
      %v1044 = vmul.f32 %v763, %v763
      %v1045 = vmul.f32 %v764, %v764
      %v1046 = vmul.f32 %v765, %v765
      %v1047 = vmul.f32 %v766, %v766
      %v1048 = vmul.f32 %v767, %v767
      %v1049 = vmul.f32 %v768, %v768
      %v1050 = vmul.f32 %v769, %v769
      %v1051 = vmul.f32 %v770, %v770
      %v1052 = vmul.f32 %v771, %v771
      %v1053 = vmul.f32 %v772, %v772
      %v1054 = vmul.f32 %v773, %v773
      %v1055 = vmul.f32 %v774, %v774
      %v1056 = vmul.f32 %v775, %v775
      %v1057 = vmul.f32 %v776, %v776
      %v1058 = vsel %vm437, %v1042, 0.0
      %v1059 = vsel %vm437, %v1043, 0.0
      %v1060 = vadd.f32 %v1058, %v1059
      %v1061 = vsel %vm437, %v1044, 0.0
      %v1062 = vadd.f32 %v1060, %v1061
      %v1063 = vsel %vm437, %v1045, 0.0
      %v1064 = vadd.f32 %v1062, %v1063
      %v1065 = vsel %vm437, %v1046, 0.0
      %v1066 = vadd.f32 %v1064, %v1065
      %v1067 = vsel %vm437, %v1047, 0.0
      %v1068 = vadd.f32 %v1066, %v1067
      %v1069 = vsel %vm437, %v1048, 0.0
      %v1070 = vadd.f32 %v1068, %v1069
      %v1071 = vsel %vm437, %v1049, 0.0
      %v1072 = vadd.f32 %v1070, %v1071
      %v1073 = vsel %vm437, %v1050, 0.0
      %v1074 = vadd.f32 %v1072, %v1073
      %v1075 = vsel %vm437, %v1051, 0.0
      %v1076 = vadd.f32 %v1074, %v1075
      %v1077 = vsel %vm437, %v1052, 0.0
      %v1078 = vadd.f32 %v1076, %v1077
      %v1079 = vsel %vm437, %v1053, 0.0
      %v1080 = vadd.f32 %v1078, %v1079
      %v1081 = vsel %vm437, %v1054, 0.0
      %v1082 = vadd.f32 %v1080, %v1081
      %v1083 = vsel %vm437, %v1055, 0.0
      %v1084 = vadd.f32 %v1082, %v1083
      %v1085 = vsel %vm437, %v1056, 0.0
      %v1086 = vadd.f32 %v1084, %v1085
      %v1087 = vsel %vm437, %v1057, 0.0
      %v1088 = vadd.f32 %v1086, %v1087
      %v1089 = vrot.slane %v1088, 4
      %v1090 = vadd.f32 %v1088, %v1089
      %v1091 = vrot.slane %v1090, 2
      %v1092 = vadd.f32 %v1090, %v1091
      %v1093 = vrot.slane %v1092, 1
      %v1094 = vadd.f32 %v1092, %v1093
      %v1095 = vsel %vm1001, %v1041, %v1094
      %1096 = vst.msk [vmem:[%s406] sm:$0x3] %vm1003, %v1095
      %p1097 = scmp.lt.s32.totalorder %s23, 1
      %s1098 = scalar_select %p1097, %s23, 1
      %p1099 = scmp.lt.s32.totalorder %s24, 1
      %s1100 = scalar_select %p1099, %s24, 1
      %s1101 = smul.addr %s1098, 2
      %s1102 = sadd.s32 %s1100, %s1101
      %s1103 = smul.addr %s1102, 8
      %s1104 = scalar_lea.vmem %s5, %s1103
      %p1105 = scmp.lt.s32.totalorder %s23, 1
      %s1106 = scalar_select %p1105, %s23, 1
      %p1107 = scmp.lt.s32.totalorder %s24, 1
      %s1108 = scalar_select %p1107, %s24, 1
      %s1109 = smul.addr %s1106, 2
      %s1110 = sadd.s32 %s1108, %s1109
      %s1111 = smul.addr %s1110, 2
      %s1112 = scalar_lea.vmem %s6, %s1111
      %p1113 = scmp.lt.s32.totalorder %s23, 1
      %s1114 = scalar_select %p1113, %s23, 1
      %p1115 = scmp.lt.s32.totalorder %s24, 1
      %s1116 = scalar_select %p1115, %s24, 1
      %s1117 = smul.addr %s1114, 2
      %s1118 = sadd.s32 %s1116, %s1117
      %s1119 = smul.addr %s1118, 2
      %s1120 = scalar_lea.vmem %s7, %s1119
      // Predicated region
      $region41: #{gnn_layer_forward.4} parent=39 // pred_check
        %p1121 = pneg %p175
      $region42: #{gnn_layer_forward.4} parent=39 // pred_check_branch
        %1123 = sbr.rel (%p1121) target = $region44
      $region43: #{gnn_layer_forward.4} parent=39 // pred_region
        _
      $region44: #{gnn_layer_forward.4} parent=39 // pred_fallthru
        _
      // Predicated region
      $region45: #{gnn_layer_forward.4} parent=39 // pred_check
        %p1124 = pneg %p203
      $region46: #{gnn_layer_forward.4} parent=39 // pred_check_branch
        %1126 = sbr.rel (%p1124) target = $region48
      $region47: #{gnn_layer_forward.4} parent=39 // pred_region
        _
      $region48: #{gnn_layer_forward.4} parent=39 // pred_fallthru
        _
      // Predicated region
      $region49: #{gnn_layer_forward.4} parent=39 // pred_check
        %p1127 = pneg %p231
      $region50: #{gnn_layer_forward.4} parent=39 // pred_check_branch
        %1129 = sbr.rel (%p1127) target = $region52
      $region51: #{gnn_layer_forward.4} parent=39 // pred_region
        _
      $region52: #{gnn_layer_forward.4} parent=39 // pred_fallthru
        _
    $region40: #{gnn_layer_forward.4} parent=5 // pred_fallthru
      _
    %p1130 = scmp.le.s32.totalorder 2, %s14
    // Predicated region
    $region53: #{gnn_layer_forward.4} parent=5 // pred_check
      %p1131 = pneg %p1130
    $region54: #{gnn_layer_forward.4} parent=5 // pred_check_branch
      %1133 = sbr.rel (%p1131) target = $region56
    $region55: #{gnn_layer_forward.4} parent=5 // pred_region
      %s1134 = ssub.s32 %s14, 2
      // Predicated region
      $region57: #{gnn_layer_forward.4} parent=55 // pred_check
        %p1135 = pneg %p181
      $region58: #{gnn_layer_forward.4} parent=55 // pred_check_branch
        %1137 = sbr.rel (%p1135) target = $region60
      $region59: #{gnn_layer_forward.4} parent=55 // pred_region
        %p1138 = scmp.lt.s32.totalorder %s25, 1
        %s1139 = scalar_select %p1138, %s25, 1
        %p1140 = scmp.lt.s32.totalorder %s26, 1
        %s1141 = scalar_select %p1140, %s26, 1
        %s1142 = smul.addr %s1139, 2
        %s1143 = sadd.s32 %s1141, %s1142
        %s1144 = smul.addr %s1143, 8
        %s1145 = scalar_lea.vmem %s5, %s1144
      $region60: #{gnn_layer_forward.4} parent=55 // pred_fallthru
        _
      // Predicated region
      $region61: #{gnn_layer_forward.4} parent=55 // pred_check
        %p1146 = pneg %p209
      $region62: #{gnn_layer_forward.4} parent=55 // pred_check_branch
        %1148 = sbr.rel (%p1146) target = $region64
      $region63: #{gnn_layer_forward.4} parent=55 // pred_region
        %p1149 = scmp.lt.s32.totalorder %s25, 1
        %s1150 = scalar_select %p1149, %s25, 1
        %p1151 = scmp.lt.s32.totalorder %s26, 1
        %s1152 = scalar_select %p1151, %s26, 1
        %s1153 = smul.addr %s1150, 2
        %s1154 = sadd.s32 %s1152, %s1153
        %s1155 = smul.addr %s1154, 2
        %s1156 = scalar_lea.vmem %s6, %s1155
      $region64: #{gnn_layer_forward.4} parent=55 // pred_fallthru
        _
      // Predicated region
      $region65: #{gnn_layer_forward.4} parent=55 // pred_check
        %p1157 = pneg %p237
      $region66: #{gnn_layer_forward.4} parent=55 // pred_check_branch
        %1159 = sbr.rel (%p1157) target = $region68
      $region67: #{gnn_layer_forward.4} parent=55 // pred_region
        %p1160 = scmp.lt.s32.totalorder %s25, 1
        %s1161 = scalar_select %p1160, %s25, 1
        %p1162 = scmp.lt.s32.totalorder %s26, 1
        %s1163 = scalar_select %p1162, %s26, 1
        %s1164 = smul.addr %s1161, 2
        %s1165 = sadd.s32 %s1163, %s1164
        %s1166 = smul.addr %s1165, 2
        %s1167 = scalar_lea.vmem %s7, %s1166
      $region68: #{gnn_layer_forward.4} parent=55 // pred_fallthru
        _
    $region56: #{gnn_layer_forward.4} parent=5 // pred_fallthru
      _
  $region6: #{gnn_layer_forward.4} parent=0 // loop_footer
    %s18 = sadd.s32 1, %s14
  $region7: #{gnn_layer_forward.4} parent=0 // loop_footer_branch
    %13 = sbr.rel target = $region3
  $region8: #{gnn_layer_forward.4} parent=0 // loop_exit
    _

// kernel: gnn_layer_forward.5
$region0: #{gnn_layer_forward.5}
  #allocation0 [shape = 'u32[]', space=smem, size = 0x4, offset = 0x4, fixed_abs, tag = 'smem constant byte address 0x4 - core index']
  #allocation1 [shape = 'u32[144,128]{1,0:T(1,128)}', space=vmem, size = 0x12000, scoped, tag = 'internal scratch']
  %s0 = inlined_call_operand.vmem [shape: f32[2,16,32], index: 0, kind: input, shape index: {}, may-alias: {0,9}]
  %s1 = inlined_call_operand.vmem [shape: f32[2,256,32], index: 1, kind: input, shape index: {}, may-alias: {1,10}]
  %s2 = inlined_call_operand.vmem [shape: f32[2,16,32], index: 2, kind: input, shape index: {}]
  %s3 = inlined_call_operand.vmem [shape: f32[2,16,64], index: 3, kind: input, shape index: {}]
  %s4 = inlined_call_operand.vmem [shape: f32[2,16,64], index: 4, kind: input, shape index: {}]
  %s5 = inlined_call_operand.vmem [shape: f32[32,32], index: 5, kind: input, shape index: {}]
  %s6 = inlined_call_operand.vmem [shape: f32[1,32], index: 6, kind: input, shape index: {}]
  %s7 = inlined_call_operand.vmem [shape: f32[2,32], index: 7, kind: input, shape index: {}]
  %s8 = inlined_call_operand.vmem [shape: f32[2,32], index: 8, kind: input, shape index: {}]
  %s9 = inlined_call_operand.vmem [shape: f32[2,16,32], index: 9, kind: output, shape index: {0}, may-alias: {0,9}]
  %s10 = inlined_call_operand.vmem [shape: f32[2,256,32], index: 10, kind: output, shape index: {1}, may-alias: {1,10}]
  %11 = xla_tuple %s9, %s10
  %s12 = sld [smem:[#allocation0]]
  $region77: #{gnn_layer_forward.5} parent=0
    _
  %s14 = ssub.s32 1, %s12
  %s15 = scalar_select 0, %s14, %s12
  loop: start=0, step=1, limit=6
  $region2: #{gnn_layer_forward.5} parent=0 // loop_pre_header
    _
  $region3: #{gnn_layer_forward.5} parent=0 // loop_header
    %s17 = sphi 0, %s21
    %p18 = scmp.ge.s32.totalorder %s17, 6
    %s24 = sphi 0, %s36
    %s25 = sphi 0, %s32
    %s26 = sphi 0, %s24
    %s27 = sphi 0, %s25
    %s28 = sphi 0, %s26
    %s29 = sphi 0, %s27
    %s41 = sphi 0, %s43
    %s44 = sphi 0, %s41
    %s45 = sphi 0, %s44
    %s61 = sphi 0, %s45
    %s69 = sphi 0, %s71
    %s72 = sphi 0, %s69
    %s73 = sphi 0, %s72
    %s89 = sphi 0, %s73
    %s97 = sphi 0, %s99
    %s100 = sphi 0, %s97
    %s101 = sphi 0, %s100
    %s117 = sphi 0, %s101
    %s123 = sphi 0, %s125
    %s126 = sphi 0, %s123
    %s127 = sphi 0, %s126
    %s143 = sphi 0, %s127
    %s151 = sphi 0, %s153
    %s154 = sphi 0, %s151
    %s155 = sphi 0, %s154
    %s171 = sphi 0, %s155
    %s175 = sphi 0, %s175
    %s177 = sphi 0, %s175
    %s178 = sphi 0, %s177
    %s192 = sphi 0, %s178
    %s196 = sphi 0, %s196
    %s198 = sphi 0, %s196
    %s199 = sphi 0, %s198
    %s213 = sphi 0, %s199
    %s217 = sphi 0, %s217
    %s219 = sphi 0, %s217
    %s220 = sphi 0, %s219
    %s234 = sphi 0, %s220
    %s238 = sphi 0, %s238
    %s240 = sphi 0, %s238
    %s241 = sphi 0, %s240
    %s255 = sphi 0, %s241
    %s263 = sphi 0, %s265
    %s266 = sphi 0, %s263
    %s267 = sphi 0, %s266
    %s283 = sphi 0, %s267
    %s291 = sphi 0, %s293
    %s294 = sphi 0, %s291
    %s295 = sphi 0, %s294
    %s311 = sphi 0, %s295
  $region4: #{gnn_layer_forward.5} parent=0 // loop_header_branch
    %20 = sbr.rel (%p18) target = $region8
  $region5: #{gnn_layer_forward.5} parent=0 // loop_body
    %s22 = ssub.s32 %s17, 1
    %s23 = ssub.s32 %s17, 2
    %s30 = sadd.s32 1, %s25
    %p31 = scmp.ge.s32.totalorder %s30, 2
    %s32 = scalar_select %p31, 0, %s30
    %s33 = sadd.s32 1, %s24
    %s34 = scalar_select %p31, %s33, %s24
    %p35 = scmp.ge.s32.totalorder %s34, 2
    %s36 = scalar_select %p35, 0, %s34
    %s37 = ssub.s32 %s24, %s36
    %s38 = ssub.s32 %s25, %s32
    %s39 = sor.u32 %s37, %s38
    %p40 = scmp.eq.s32.totalorder %s39, 0
    %s42 = sadd.s32 %s41, 1
    %s43 = scalar_select %p40, %s41, %s42
    %p46 = pneg %p40
    %p47 = scmp.eq.s32.totalorder %s17, 3
    %p48 = por %p46, %p47
    %p49 = scmp.ne.s32.totalorder %s41, %s44
    %p50 = scmp.eq.s32.totalorder %s17, 0
    %p51 = por %p49, %p50
    %p52 = scmp.ne.s32.totalorder %s41, %s44
    %p53 = scmp.eq.s32.totalorder %s22, 3
    %p54 = por %p52, %p53
    %p55 = scmp.ne.s32.totalorder %s44, %s45
    %p56 = scmp.eq.s32.totalorder %s22, 0
    %p57 = por %p55, %p56
    %p58 = scmp.ne.s32.totalorder %s44, %s45
    %p59 = scmp.eq.s32.totalorder %s23, 3
    %p60 = por %p58, %p59
    %p62 = scmp.ne.s32.totalorder %s45, %s61
    %p63 = scmp.eq.s32.totalorder %s23, 0
    %p64 = por %p62, %p63
    %s65 = ssub.s32 %s24, %s36
    %s66 = ssub.s32 %s25, %s32
    %s67 = sor.u32 %s65, %s66
    %p68 = scmp.eq.s32.totalorder %s67, 0
    %s70 = sadd.s32 %s69, 1
    %s71 = scalar_select %p68, %s69, %s70
    %p74 = pneg %p68
    %p75 = scmp.eq.s32.totalorder %s17, 3
    %p76 = por %p74, %p75
    %p77 = scmp.ne.s32.totalorder %s69, %s72
    %p78 = scmp.eq.s32.totalorder %s17, 0
    %p79 = por %p77, %p78
    %p80 = scmp.ne.s32.totalorder %s69, %s72
    %p81 = scmp.eq.s32.totalorder %s22, 3
    %p82 = por %p80, %p81
    %p83 = scmp.ne.s32.totalorder %s72, %s73
    %p84 = scmp.eq.s32.totalorder %s22, 0
    %p85 = por %p83, %p84
    %p86 = scmp.ne.s32.totalorder %s72, %s73
    %p87 = scmp.eq.s32.totalorder %s23, 3
    %p88 = por %p86, %p87
    %p90 = scmp.ne.s32.totalorder %s73, %s89
    %p91 = scmp.eq.s32.totalorder %s23, 0
    %p92 = por %p90, %p91
    %s93 = ssub.s32 %s24, %s36
    %s94 = ssub.s32 %s25, %s32
    %s95 = sor.u32 %s93, %s94
    %p96 = scmp.eq.s32.totalorder %s95, 0
    %s98 = sadd.s32 %s97, 1
    %s99 = scalar_select %p96, %s97, %s98
    %p102 = pneg %p96
    %p103 = scmp.eq.s32.totalorder %s17, 3
    %p104 = por %p102, %p103
    %p105 = scmp.ne.s32.totalorder %s97, %s100
    %p106 = scmp.eq.s32.totalorder %s17, 0
    %p107 = por %p105, %p106
    %p108 = scmp.ne.s32.totalorder %s97, %s100
    %p109 = scmp.eq.s32.totalorder %s22, 3
    %p110 = por %p108, %p109
    %p111 = scmp.ne.s32.totalorder %s100, %s101
    %p112 = scmp.eq.s32.totalorder %s22, 0
    %p113 = por %p111, %p112
    %p114 = scmp.ne.s32.totalorder %s100, %s101
    %p115 = scmp.eq.s32.totalorder %s23, 3
    %p116 = por %p114, %p115
    %p118 = scmp.ne.s32.totalorder %s101, %s117
    %p119 = scmp.eq.s32.totalorder %s23, 0
    %p120 = por %p118, %p119
    %s121 = ssub.s32 %s24, %s36
    %p122 = scmp.eq.s32.totalorder %s121, 0
    %s124 = sadd.s32 %s123, 1
    %s125 = scalar_select %p122, %s123, %s124
    %p128 = pneg %p122
    %p129 = scmp.eq.s32.totalorder %s17, 3
    %p130 = por %p128, %p129
    %p131 = scmp.ne.s32.totalorder %s123, %s126
    %p132 = scmp.eq.s32.totalorder %s17, 0
    %p133 = por %p131, %p132
    %p134 = scmp.ne.s32.totalorder %s123, %s126
    %p135 = scmp.eq.s32.totalorder %s22, 3
    %p136 = por %p134, %p135
    %p137 = scmp.ne.s32.totalorder %s126, %s127
    %p138 = scmp.eq.s32.totalorder %s22, 0
    %p139 = por %p137, %p138
    %p140 = scmp.ne.s32.totalorder %s126, %s127
    %p141 = scmp.eq.s32.totalorder %s23, 3
    %p142 = por %p140, %p141
    %p144 = scmp.ne.s32.totalorder %s127, %s143
    %p145 = scmp.eq.s32.totalorder %s23, 0
    %p146 = por %p144, %p145
    %s147 = ssub.s32 %s24, %s36
    %s148 = ssub.s32 %s25, %s32
    %s149 = sor.u32 %s147, %s148
    %p150 = scmp.eq.s32.totalorder %s149, 0
    %s152 = sadd.s32 %s151, 1
    %s153 = scalar_select %p150, %s151, %s152
    %p156 = pneg %p150
    %p157 = scmp.eq.s32.totalorder %s17, 3
    %p158 = por %p156, %p157
    %p159 = scmp.ne.s32.totalorder %s151, %s154
    %p160 = scmp.eq.s32.totalorder %s17, 0
    %p161 = por %p159, %p160
    %p162 = scmp.ne.s32.totalorder %s151, %s154
    %p163 = scmp.eq.s32.totalorder %s22, 3
    %p164 = por %p162, %p163
    %p165 = scmp.ne.s32.totalorder %s154, %s155
    %p166 = scmp.eq.s32.totalorder %s22, 0
    %p167 = por %p165, %p166
    %p168 = scmp.ne.s32.totalorder %s154, %s155
    %p169 = scmp.eq.s32.totalorder %s23, 3
    %p170 = por %p168, %p169
    %p172 = scmp.ne.s32.totalorder %s155, %s171
    %p173 = scmp.eq.s32.totalorder %s23, 0
    %p174 = por %p172, %p173
    %s176 = sadd.s32 %s175, 1
    %p179 = scmp.eq.s32.totalorder %s17, 3
    %p180 = scmp.ne.s32.totalorder %s175, %s177
    %p181 = scmp.eq.s32.totalorder %s17, 0
    %p182 = por %p180, %p181
    %p183 = scmp.ne.s32.totalorder %s175, %s177
    %p184 = scmp.eq.s32.totalorder %s22, 3
    %p185 = por %p183, %p184
    %p186 = scmp.ne.s32.totalorder %s177, %s178
    %p187 = scmp.eq.s32.totalorder %s22, 0
    %p188 = por %p186, %p187
    %p189 = scmp.ne.s32.totalorder %s177, %s178
    %p190 = scmp.eq.s32.totalorder %s23, 3
    %p191 = por %p189, %p190
    %p193 = scmp.ne.s32.totalorder %s178, %s192
    %p194 = scmp.eq.s32.totalorder %s23, 0
    %p195 = por %p193, %p194
    %s197 = sadd.s32 %s196, 1
    %p200 = scmp.eq.s32.totalorder %s17, 3
    %p201 = scmp.ne.s32.totalorder %s196, %s198
    %p202 = scmp.eq.s32.totalorder %s17, 0
    %p203 = por %p201, %p202
    %p204 = scmp.ne.s32.totalorder %s196, %s198
    %p205 = scmp.eq.s32.totalorder %s22, 3
    %p206 = por %p204, %p205
    %p207 = scmp.ne.s32.totalorder %s198, %s199
    %p208 = scmp.eq.s32.totalorder %s22, 0
    %p209 = por %p207, %p208
    %p210 = scmp.ne.s32.totalorder %s198, %s199
    %p211 = scmp.eq.s32.totalorder %s23, 3
    %p212 = por %p210, %p211
    %p214 = scmp.ne.s32.totalorder %s199, %s213
    %p215 = scmp.eq.s32.totalorder %s23, 0
    %p216 = por %p214, %p215
    %s218 = sadd.s32 %s217, 1
    %p221 = scmp.eq.s32.totalorder %s17, 3
    %p222 = scmp.ne.s32.totalorder %s217, %s219
    %p223 = scmp.eq.s32.totalorder %s17, 0
    %p224 = por %p222, %p223
    %p225 = scmp.ne.s32.totalorder %s217, %s219
    %p226 = scmp.eq.s32.totalorder %s22, 3
    %p227 = por %p225, %p226
    %p228 = scmp.ne.s32.totalorder %s219, %s220
    %p229 = scmp.eq.s32.totalorder %s22, 0
    %p230 = por %p228, %p229
    %p231 = scmp.ne.s32.totalorder %s219, %s220
    %p232 = scmp.eq.s32.totalorder %s23, 3
    %p233 = por %p231, %p232
    %p235 = scmp.ne.s32.totalorder %s220, %s234
    %p236 = scmp.eq.s32.totalorder %s23, 0
    %p237 = por %p235, %p236
    %s239 = sadd.s32 %s238, 1
    %p242 = scmp.eq.s32.totalorder %s17, 3
    %p243 = scmp.ne.s32.totalorder %s238, %s240
    %p244 = scmp.eq.s32.totalorder %s17, 0
    %p245 = por %p243, %p244
    %p246 = scmp.ne.s32.totalorder %s238, %s240
    %p247 = scmp.eq.s32.totalorder %s22, 3
    %p248 = por %p246, %p247
    %p249 = scmp.ne.s32.totalorder %s240, %s241
    %p250 = scmp.eq.s32.totalorder %s22, 0
    %p251 = por %p249, %p250
    %p252 = scmp.ne.s32.totalorder %s240, %s241
    %p253 = scmp.eq.s32.totalorder %s23, 3
    %p254 = por %p252, %p253
    %p256 = scmp.ne.s32.totalorder %s241, %s255
    %p257 = scmp.eq.s32.totalorder %s23, 0
    %p258 = por %p256, %p257
    %s259 = ssub.s32 %s24, %s36
    %s260 = ssub.s32 %s25, %s32
    %s261 = sor.u32 %s259, %s260
    %p262 = scmp.eq.s32.totalorder %s261, 0
    %s264 = sadd.s32 %s263, 1
    %s265 = scalar_select %p262, %s263, %s264
    %p268 = pneg %p262
    %p269 = scmp.eq.s32.totalorder %s17, 3
    %p270 = por %p268, %p269
    %p271 = scmp.ne.s32.totalorder %s263, %s266
    %p272 = scmp.eq.s32.totalorder %s17, 0
    %p273 = por %p271, %p272
    %p274 = scmp.ne.s32.totalorder %s263, %s266
    %p275 = scmp.eq.s32.totalorder %s22, 3
    %p276 = por %p274, %p275
    %p277 = scmp.ne.s32.totalorder %s266, %s267
    %p278 = scmp.eq.s32.totalorder %s22, 0
    %p279 = por %p277, %p278
    %p280 = scmp.ne.s32.totalorder %s266, %s267
    %p281 = scmp.eq.s32.totalorder %s23, 3
    %p282 = por %p280, %p281
    %p284 = scmp.ne.s32.totalorder %s267, %s283
    %p285 = scmp.eq.s32.totalorder %s23, 0
    %p286 = por %p284, %p285
    %s287 = ssub.s32 %s24, %s36
    %s288 = ssub.s32 %s25, %s32
    %s289 = sor.u32 %s287, %s288
    %p290 = scmp.eq.s32.totalorder %s289, 0
    %s292 = sadd.s32 %s291, 1
    %s293 = scalar_select %p290, %s291, %s292
    %p296 = pneg %p290
    %p297 = scmp.eq.s32.totalorder %s17, 3
    %p298 = por %p296, %p297
    %p299 = scmp.ne.s32.totalorder %s291, %s294
    %p300 = scmp.eq.s32.totalorder %s17, 0
    %p301 = por %p299, %p300
    %p302 = scmp.ne.s32.totalorder %s291, %s294
    %p303 = scmp.eq.s32.totalorder %s22, 3
    %p304 = por %p302, %p303
    %p305 = scmp.ne.s32.totalorder %s294, %s295
    %p306 = scmp.eq.s32.totalorder %s22, 0
    %p307 = por %p305, %p306
    %p308 = scmp.ne.s32.totalorder %s294, %s295
    %p309 = scmp.eq.s32.totalorder %s23, 3
    %p310 = por %p308, %p309
    %p312 = scmp.ne.s32.totalorder %s295, %s311
    %p313 = scmp.eq.s32.totalorder %s23, 0
    %p314 = por %p312, %p313
    %p315 = scmp.le.s32.totalorder 1, %s17
    %p316 = scmp.lt.s32.totalorder %s17, 5
    %p317 = pnand %p315, %p316
    %p318 = pneg %p317
    // Predicated region
    $region9: #{gnn_layer_forward.5} parent=5 // pred_check
      _
    $region10: #{gnn_layer_forward.5} parent=5 // pred_check_branch
      %320 = sbr.rel (%p317) target = $region12
    $region11: #{gnn_layer_forward.5} parent=5 // pred_region
      %s321 = ssub.s32 %s17, 1
      // Predicated region
      $region13: #{gnn_layer_forward.5} parent=11 // pred_check
        %p322 = pneg %p188
      $region14: #{gnn_layer_forward.5} parent=11 // pred_check_branch
        %324 = sbr.rel (%p322) target = $region16
      $region15: #{gnn_layer_forward.5} parent=11 // pred_region
        _
      $region16: #{gnn_layer_forward.5} parent=11 // pred_fallthru
        _
      // Predicated region
      $region17: #{gnn_layer_forward.5} parent=11 // pred_check
        %p325 = pneg %p209
      $region18: #{gnn_layer_forward.5} parent=11 // pred_check_branch
        %327 = sbr.rel (%p325) target = $region20
      $region19: #{gnn_layer_forward.5} parent=11 // pred_region
        _
      $region20: #{gnn_layer_forward.5} parent=11 // pred_fallthru
        _
      // Predicated region
      $region21: #{gnn_layer_forward.5} parent=11 // pred_check
        %p328 = pneg %p230
      $region22: #{gnn_layer_forward.5} parent=11 // pred_check_branch
        %330 = sbr.rel (%p328) target = $region24
      $region23: #{gnn_layer_forward.5} parent=11 // pred_region
        _
      $region24: #{gnn_layer_forward.5} parent=11 // pred_fallthru
        _
      // Predicated region
      $region25: #{gnn_layer_forward.5} parent=11 // pred_check
        %p331 = pneg %p251
      $region26: #{gnn_layer_forward.5} parent=11 // pred_check_branch
        %333 = sbr.rel (%p331) target = $region28
      $region27: #{gnn_layer_forward.5} parent=11 // pred_region
        _
      $region28: #{gnn_layer_forward.5} parent=11 // pred_fallthru
        _
    $region12: #{gnn_layer_forward.5} parent=5 // pred_fallthru
      _
    %p334 = scmp.lt.s32.totalorder %s17, 4
    // Predicated region
    $region29: #{gnn_layer_forward.5} parent=5 // pred_check
      %p335 = pneg %p334
    $region30: #{gnn_layer_forward.5} parent=5 // pred_check_branch
      %337 = sbr.rel (%p335) target = $region32
    $region31: #{gnn_layer_forward.5} parent=5 // pred_region
      // Predicated region
      $region33: #{gnn_layer_forward.5} parent=31 // pred_check
        %p338 = pneg %p51
      $region34: #{gnn_layer_forward.5} parent=31 // pred_check_branch
        %340 = sbr.rel (%p338) target = $region36
      $region35: #{gnn_layer_forward.5} parent=31 // pred_region
        %p341 = scmp.lt.s32.totalorder %s24, 1
        %s342 = scalar_select %p341, %s24, 1
        %p343 = scmp.lt.s32.totalorder %s25, 1
        %s344 = scalar_select %p343, %s25, 1
        %s345 = smul.addr %s342, 2
        %s346 = sadd.s32 %s344, %s345
        %s347 = smul.addr %s346, 8
        %s348 = scalar_lea.vmem %s0, %s347
      $region36: #{gnn_layer_forward.5} parent=31 // pred_fallthru
        _
      // Predicated region
      $region37: #{gnn_layer_forward.5} parent=31 // pred_check
        %p349 = pneg %p79
      $region38: #{gnn_layer_forward.5} parent=31 // pred_check_branch
        %351 = sbr.rel (%p349) target = $region40
      $region39: #{gnn_layer_forward.5} parent=31 // pred_region
        %s352 = smul.u32 16, %s25
        %p353 = scmp.lt.s32.totalorder %s24, 1
        %s354 = scalar_select %p353, %s24, 1
        %p355 = scmp.lt.s32.totalorder %s352, 31
        %s356 = scalar_select %p355, %s352, 31
        %s357 = smul.addr %s354, 32
        %s358 = sadd.s32 %s356, %s357
        %s359 = smul.addr %s358, 8
        %s360 = scalar_lea.vmem %s1, %s359
        %s361 = smul.u32 16, %s25
      $region40: #{gnn_layer_forward.5} parent=31 // pred_fallthru
        _
      // Predicated region
      $region41: #{gnn_layer_forward.5} parent=31 // pred_check
        %p362 = pneg %p107
      $region42: #{gnn_layer_forward.5} parent=31 // pred_check_branch
        %364 = sbr.rel (%p362) target = $region44
      $region43: #{gnn_layer_forward.5} parent=31 // pred_region
        %p365 = scmp.lt.s32.totalorder %s24, 1
        %s366 = scalar_select %p365, %s24, 1
        %p367 = scmp.lt.s32.totalorder %s25, 1
        %s368 = scalar_select %p367, %s25, 1
        %s369 = smul.addr %s366, 2
        %s370 = sadd.s32 %s368, %s369
        %s371 = smul.addr %s370, 8
        %s372 = scalar_lea.vmem %s2, %s371
      $region44: #{gnn_layer_forward.5} parent=31 // pred_fallthru
        _
      // Predicated region
      $region45: #{gnn_layer_forward.5} parent=31 // pred_check
        %p373 = pneg %p133
      $region46: #{gnn_layer_forward.5} parent=31 // pred_check_branch
        %375 = sbr.rel (%p373) target = $region48
      $region47: #{gnn_layer_forward.5} parent=31 // pred_region
        %p376 = scmp.lt.s32.totalorder %s24, 1
        %s377 = scalar_select %p376, %s24, 1
        %s378 = smul.addr %s377, 2
        %s379 = smul.addr %s378, 8
        %s380 = scalar_lea.vmem %s3, %s379
      $region48: #{gnn_layer_forward.5} parent=31 // pred_fallthru
        _
      // Predicated region
      $region49: #{gnn_layer_forward.5} parent=31 // pred_check
        %p381 = pneg %p161
      $region50: #{gnn_layer_forward.5} parent=31 // pred_check_branch
        %383 = sbr.rel (%p381) target = $region52
      $region51: #{gnn_layer_forward.5} parent=31 // pred_region
        %p384 = scmp.lt.s32.totalorder %s24, 1
        %s385 = scalar_select %p384, %s24, 1
        %p386 = scmp.lt.s32.totalorder %s25, 1
        %s387 = scalar_select %p386, %s25, 1
        %s388 = smul.addr %s385, 2
        %s389 = sadd.s32 %s387, %s388
        %s390 = smul.addr %s389, 8
        %s391 = scalar_lea.vmem %s4, %s390
      $region52: #{gnn_layer_forward.5} parent=31 // pred_fallthru
        _
    $region32: #{gnn_layer_forward.5} parent=5 // pred_fallthru
      _
    %p392 = scmp.le.s32.totalorder 1, %s17
    %p393 = scmp.lt.s32.totalorder %s17, 5
    %p394 = pnand %p392, %p393
    %p395 = pneg %p394
    // Predicated region
    $region53: #{gnn_layer_forward.5} parent=5 // pred_check
      _
    $region54: #{gnn_layer_forward.5} parent=5 // pred_check_branch
      %397 = sbr.rel (%p394) target = $region56
    $region55: #{gnn_layer_forward.5} parent=5 // pred_region
      %s398 = ssub.s32 %s17, 1
      %p399 = scmp.lt.s32.totalorder %s26, 1
      %s400 = scalar_select %p399, %s26, 1
      %p401 = scmp.lt.s32.totalorder %s27, 1
      %s402 = scalar_select %p401, %s27, 1
      %s403 = smul.addr %s400, 2
      %s404 = sadd.s32 %s402, %s403
      %s405 = smul.addr %s404, 8
      %s406 = scalar_lea.vmem %s0, %s405
      %p407 = pneg %p57
      %p408 = pneg %p54
      %s409 = smul.u32 16, %s27
      %p410 = scmp.lt.s32.totalorder %s26, 1
      %s411 = scalar_select %p410, %s26, 1
      %p412 = scmp.lt.s32.totalorder %s409, 31
      %s413 = scalar_select %p412, %s409, 31
      %s414 = smul.addr %s411, 32
      %s415 = sadd.s32 %s413, %s414
      %s416 = smul.addr %s415, 8
      %s417 = scalar_lea.vmem %s1, %s416
      %p418 = pneg %p85
      %p419 = pneg %p82
      %p420 = scmp.lt.s32.totalorder %s26, 1
      %s421 = scalar_select %p420, %s26, 1
      %p422 = scmp.lt.s32.totalorder %s27, 1
      %s423 = scalar_select %p422, %s27, 1
      %s424 = smul.addr %s421, 2
      %s425 = sadd.s32 %s423, %s424
      %s426 = smul.addr %s425, 8
      %s427 = scalar_lea.vmem %s2, %s426
      %p428 = pneg %p113
      %p429 = pneg %p110
      %p430 = scmp.lt.s32.totalorder %s26, 1
      %s431 = scalar_select %p430, %s26, 1
      %s432 = smul.addr %s431, 2
      %s433 = smul.addr %s432, 8
      %s434 = scalar_lea.vmem %s3, %s433
      %p435 = pneg %p139
      %p436 = pneg %p136
      %p437 = scmp.lt.s32.totalorder %s26, 1
      %s438 = scalar_select %p437, %s26, 1
      %p439 = scmp.lt.s32.totalorder %s27, 1
      %s440 = scalar_select %p439, %s27, 1
      %s441 = smul.addr %s438, 2
      %s442 = sadd.s32 %s440, %s441
      %s443 = smul.addr %s442, 8
      %s444 = scalar_lea.vmem %s4, %s443
      %p445 = pneg %p167
      %p446 = pneg %p164
      %p447 = pneg %p188
      %p448 = pneg %p185
      %p449 = pneg %p209
      %p450 = pneg %p206
      %p451 = pneg %p230
      %p452 = pneg %p227
      %p453 = pneg %p251
      %p454 = pneg %p248
      %p455 = pneg %p279
      %p456 = pneg %p276
      %p457 = scmp.lt.s32.totalorder %s26, 1
      %s458 = scalar_select %p457, %s26, 1
      %p459 = scmp.lt.s32.totalorder %s27, 1
      %s460 = scalar_select %p459, %s27, 1
      %s461 = smul.addr %s458, 2
      %s462 = sadd.s32 %s460, %s461
      %s463 = smul.addr %s462, 8
      %s464 = scalar_lea.vmem %s9, %s463
      %p465 = pneg %p307
      %p466 = pneg %p304
      %s467 = smul.u32 16, %s27
      %p468 = scmp.lt.s32.totalorder %s26, 1
      %s469 = scalar_select %p468, %s26, 1
      %p470 = scmp.lt.s32.totalorder %s467, 31
      %s471 = scalar_select %p470, %s467, 31
      %s472 = smul.addr %s469, 32
      %s473 = sadd.s32 %s471, %s472
      %s474 = smul.addr %s473, 8
      %s475 = scalar_lea.vmem %s10, %s474
      %p476 = scmp.lt.s32.totalorder %s26, 1
      %s477 = scalar_select %p476, %s26, 1
      %p478 = scmp.lt.s32.totalorder %s27, 1
      %s479 = scalar_select %p478, %s27, 1
      %s480 = smul.addr %s477, 2
      %s481 = sadd.s32 %s479, %s480
      %s482 = smul.addr %s481, 8
      %s483 = scalar_lea.vmem %s0, %s482
      %s484 = smul.u32 16, %s27
      %p485 = scmp.lt.s32.totalorder %s26, 1
      %s486 = scalar_select %p485, %s26, 1
      %p487 = scmp.lt.s32.totalorder %s484, 31
      %s488 = scalar_select %p487, %s484, 31
      %s489 = smul.addr %s486, 32
      %s490 = sadd.s32 %s488, %s489
      %s491 = smul.addr %s490, 8
      %s492 = scalar_lea.vmem %s1, %s491
      %s493 = smul.u32 16, %s27
      %p494 = scmp.lt.s32.totalorder %s26, 1
      %s495 = scalar_select %p494, %s26, 1
      %p496 = scmp.lt.s32.totalorder %s27, 1
      %s497 = scalar_select %p496, %s27, 1
      %s498 = smul.addr %s495, 2
      %s499 = sadd.s32 %s497, %s498
      %s500 = smul.addr %s499, 8
      %s501 = scalar_lea.vmem %s2, %s500
      %p502 = scmp.lt.s32.totalorder %s26, 1
      %s503 = scalar_select %p502, %s26, 1
      %s504 = smul.addr %s503, 2
      %s505 = smul.addr %s504, 8
      %s506 = scalar_lea.vmem %s3, %s505
      %p507 = scmp.lt.s32.totalorder %s26, 1
      %s508 = scalar_select %p507, %s26, 1
      %p509 = scmp.lt.s32.totalorder %s27, 1
      %s510 = scalar_select %p509, %s27, 1
      %s511 = smul.addr %s508, 2
      %s512 = sadd.s32 %s510, %s511
      %s513 = smul.addr %s512, 8
      %s514 = scalar_lea.vmem %s4, %s513
      %p515 = scmp.lt.s32.totalorder %s26, 1
      %s516 = scalar_select %p515, %s26, 1
      %p517 = scmp.lt.s32.totalorder %s27, 1
      %s518 = scalar_select %p517, %s27, 1
      %s519 = smul.addr %s516, 2
      %s520 = sadd.s32 %s518, %s519
      %s521 = smul.addr %s520, 8
      %s522 = scalar_lea.vmem %s9, %s521
      %s523 = smul.u32 16, %s27
      %p524 = scmp.lt.s32.totalorder %s26, 1
      %s525 = scalar_select %p524, %s26, 1
      %p526 = scmp.lt.s32.totalorder %s523, 31
      %s527 = scalar_select %p526, %s523, 31
      %s528 = smul.addr %s525, 32
      %s529 = sadd.s32 %s527, %s528
      %s530 = smul.addr %s529, 8
      %s531 = scalar_lea.vmem %s10, %s530
      %s532 = smul.u32 16, %s27
      %v533 = vld [vmem:[%s501] sm:$0xff]
      %v534 = vld [vmem:[%s7] sm:$0x1]
      %v535 = vlaneseq
      %v536 = vshrl.u32 %v535, 7
      %v537 = vsub.s32 0, %v536
      %v538 = vrot.slane %v534, %v537
      %v539 = vmul.f32 %v533, %v538
      %v540 = vld [vmem:[%s7 + $0x1] sm:$0x1]
      %v541 = vlaneseq
      %v542 = vshrl.u32 %v541, 7
      %v543 = vsub.s32 0, %v542
      %v544 = vrot.slane %v540, %v543
      %v545 = vadd.f32 %v539, %v544
      %v546 = vld [vmem:[%s483] sm:$0xff]
      %v547 = vmax.f32 %v545, 0.0
      %v548 = vadd.f32 %v546, %v547
      %vm549 = vcmask 261120
      %550 = vst.msk [vmem:[%s522] sm:$0xff] %vm549, %v548
      %v551 = vld [vmem:[%s492] sm:$0xff]
      %v552 = vld [vmem:[%s492 + $0x8] sm:$0xff]
      %v553 = vld [vmem:[%s492 + $0x10] sm:$0xff]
      %v554 = vld [vmem:[%s492 + $0x18] sm:$0xff]
      %v555 = vld [vmem:[%s492 + $0x20] sm:$0xff]
      %v556 = vld [vmem:[%s492 + $0x28] sm:$0xff]
      %v557 = vld [vmem:[%s492 + $0x30] sm:$0xff]
      %v558 = vld [vmem:[%s492 + $0x38] sm:$0xff]
      %v559 = vld [vmem:[%s492 + $0x40] sm:$0xff]
      %v560 = vld [vmem:[%s492 + $0x48] sm:$0xff]
      %v561 = vld [vmem:[%s492 + $0x50] sm:$0xff]
      %v562 = vld [vmem:[%s492 + $0x58] sm:$0xff]
      %v563 = vld [vmem:[%s492 + $0x60] sm:$0xff]
      %v564 = vld [vmem:[%s492 + $0x68] sm:$0xff]
      %v565 = vld [vmem:[%s492 + $0x70] sm:$0xff]
      %v566 = vld [vmem:[%s492 + $0x78] sm:$0xff]
      %v567 = vld [vmem:[%s5] sm:$0xff]
      %v568 = vld [vmem:[%s5 + $0x8] sm:$0xff]
      %v569 = vld [vmem:[%s5 + $0x10] sm:$0xff]
      %v570 = vld [vmem:[%s5 + $0x18] sm:$0xff]
      %v571 = vld [vmem:[%s6] sm:$0x1]
      %v573 = vlaneseq
      %v574 = vshrl.u32 %v573, 7
      %v575 = vsub.s32 0, %v574
      %v576 = vrot.slane %v571, %v575
      %v579 = vsel %vm549, %v551, 0
      %v582 = vsel %vm549, %v552, 0
      %v585 = vsel %vm549, %v553, 0
      %v588 = vsel %vm549, %v554, 0
      %v591 = vsel %vm549, %v555, 0
      %v594 = vsel %vm549, %v556, 0
      %v597 = vsel %vm549, %v557, 0
      %v600 = vsel %vm549, %v558, 0
      %v603 = vsel %vm549, %v559, 0
      %v606 = vsel %vm549, %v560, 0
      %v609 = vsel %vm549, %v561, 0
      %v612 = vsel %vm549, %v562, 0
      %v615 = vsel %vm549, %v563, 0
      %v618 = vsel %vm549, %v564, 0
      %v621 = vsel %vm549, %v565, 0
      %v624 = vsel %vm549, %v566, 0
      %626 = vmatprep.subr.mxu0 0.0
      %627 = vmatpush1.msra.mxu0 %v567
      %628 = vmatprep.subr.mxu0 0.0
      %629 = vmatpush1.msra.mxu0 %v568
      %630 = vmatprep.subr.mxu0 0.0
      %631 = vmatpush1.msra.mxu0 %v569
      %632 = vmatprep.subr.mxu0 0.0
      %633 = vmatpush1.msra.mxu0 %v570
      %634 = vmatprep.subr.mxu0 0.0
      %635 = vmatpush1.msra.mxu0 0.0
      %636 = vmatprep.subr.mxu0 0.0
      %637 = vmatpush1.msra.mxu0 0.0
      %638 = vmatprep.subr.mxu0 0.0
      %639 = vmatpush1.msra.mxu0 0.0
      %640 = vmatprep.subr.mxu0 0.0
      %641 = vmatpush1.msra.mxu0 0.0
      %642 = vmatprep.subr.mxu0 0.0
      %643 = vmatpush1.msra.mxu0 0.0
      %644 = vmatprep.subr.mxu0 0.0
      %645 = vmatpush1.msra.mxu0 0.0
      %646 = vmatprep.subr.mxu0 0.0
      %647 = vmatpush1.msra.mxu0 0.0
      %648 = vmatprep.subr.mxu0 0.0
      %649 = vmatpush1.msra.mxu0 0.0
      %650 = vmatprep.subr.mxu0 0.0
      %651 = vmatpush1.msra.mxu0 0.0
      %652 = vmatprep.subr.mxu0 0.0
      %653 = vmatpush1.msra.mxu0 0.0
      %654 = vmatprep.subr.mxu0 0.0
      %655 = vmatpush1.msra.mxu0 0.0
      %656 = vmatprep.subr.mxu0 0.0
      %657 = vmatpush1.msra.mxu0 0.0
      %658 = vmatprep.subr.mxu0 0.0
      %659 = vmatpush1.msra.mxu0 0.0
      %660 = vmatprep.subr.mxu0 0.0
      %661 = vmatpush1.msra.mxu0 0.0
      %662 = vmatprep.subr.mxu0 0.0
      %663 = vmatpush1.msra.mxu0 0.0
      %664 = vmatprep.subr.mxu0 0.0
      %665 = vmatpush1.msra.mxu0 0.0
      %666 = vmatprep.subr.mxu0 0.0
      %667 = vmatpush1.msra.mxu0 0.0
      %668 = vmatprep.subr.mxu0 0.0
      %669 = vmatpush1.msra.mxu0 0.0
      %670 = vmatprep.subr.mxu0 0.0
      %671 = vmatpush1.msra.mxu0 0.0
      %672 = vmatprep.subr.mxu0 0.0
      %673 = vmatpush1.msra.mxu0 0.0
      %674 = vmatprep.subr.mxu0 0.0
      %675 = vmatpush1.msra.mxu0 0.0
      %676 = vmatprep.subr.mxu0 0.0
      %677 = vmatpush1.msra.mxu0 0.0
      %678 = vmatprep.subr.mxu0 0.0
      %679 = vmatpush1.msra.mxu0 0.0
      %680 = vmatprep.subr.mxu0 0.0
      %681 = vmatpush1.msra.mxu0 0.0
      %682 = vmatprep.subr.mxu0 0.0
      %683 = vmatpush1.msra.mxu0 0.0
      %684 = vmatprep.subr.mxu0 0.0
      %685 = vmatpush1.msra.mxu0 0.0
      %686 = vmatprep.subr.mxu0 0.0
      %687 = vmatpush1.msra.mxu0 0.0
      %688 = vmatprep.subr.mxu0 0.0
      %689 = vmatpush1.msra.mxu0 0.0
      %690 = vmatprep.mubr.f32.mxu0 0.0
      %691 = vmatmul.mubr.f32.gmra.mrb[0].mxu0 %v579
      %v692 = vpop.f32.mrb[0].mxu0
      %v693 = vadd.f32 %v576, %v692
      %v694 = vpop.f32.mrb[0].mxu0
      %695 = vmatprep.mubr.f32.mxu0 0.0
      %696 = vmatmul.mubr.f32.gmra.mrb[0].mxu0 %v582
      %v697 = vpop.f32.mrb[0].mxu0
      %v698 = vadd.f32 %v576, %v697
      %v699 = vpop.f32.mrb[0].mxu0
      %700 = vmatprep.mubr.f32.mxu0 0.0
      %701 = vmatmul.mubr.f32.gmra.mrb[0].mxu0 %v585
      %v702 = vpop.f32.mrb[0].mxu0
      %v703 = vadd.f32 %v576, %v702
      %v704 = vpop.f32.mrb[0].mxu0
      %705 = vmatprep.mubr.f32.mxu0 0.0
      %706 = vmatmul.mubr.f32.gmra.mrb[0].mxu0 %v588
      %v707 = vpop.f32.mrb[0].mxu0
      %v708 = vadd.f32 %v576, %v707
      %v709 = vpop.f32.mrb[0].mxu0
      %710 = vmatprep.mubr.f32.mxu0 0.0
      %711 = vmatmul.mubr.f32.gmra.mrb[0].mxu0 %v591
      %v712 = vpop.f32.mrb[0].mxu0
      %v713 = vadd.f32 %v576, %v712
      %v714 = vpop.f32.mrb[0].mxu0
      %715 = vmatprep.mubr.f32.mxu0 0.0
      %716 = vmatmul.mubr.f32.gmra.mrb[0].mxu0 %v594
      %v717 = vpop.f32.mrb[0].mxu0
      %v718 = vadd.f32 %v576, %v717
      %v719 = vpop.f32.mrb[0].mxu0
      %720 = vmatprep.mubr.f32.mxu0 0.0
      %721 = vmatmul.mubr.f32.gmra.mrb[0].mxu0 %v597
      %v722 = vpop.f32.mrb[0].mxu0
      %v723 = vadd.f32 %v576, %v722
      %v724 = vpop.f32.mrb[0].mxu0
      %725 = vmatprep.mubr.f32.mxu0 0.0
      %726 = vmatmul.mubr.f32.gmra.mrb[0].mxu0 %v600
      %v727 = vpop.f32.mrb[0].mxu0
      %v728 = vadd.f32 %v576, %v727
      %v729 = vpop.f32.mrb[0].mxu0
      %730 = vmatprep.mubr.f32.mxu0 0.0
      %731 = vmatmul.mubr.f32.gmra.mrb[0].mxu0 %v603
      %v732 = vpop.f32.mrb[0].mxu0
      %v733 = vadd.f32 %v576, %v732
      %v734 = vpop.f32.mrb[0].mxu0
      %735 = vmatprep.mubr.f32.mxu0 0.0
      %736 = vmatmul.mubr.f32.gmra.mrb[0].mxu0 %v606
      %v737 = vpop.f32.mrb[0].mxu0
      %v738 = vadd.f32 %v576, %v737
      %v739 = vpop.f32.mrb[0].mxu0
      %740 = vmatprep.mubr.f32.mxu0 0.0
      %741 = vmatmul.mubr.f32.gmra.mrb[0].mxu0 %v609
      %v742 = vpop.f32.mrb[0].mxu0
      %v743 = vadd.f32 %v576, %v742
      %v744 = vpop.f32.mrb[0].mxu0
      %745 = vmatprep.mubr.f32.mxu0 0.0
      %746 = vmatmul.mubr.f32.gmra.mrb[0].mxu0 %v612
      %v747 = vpop.f32.mrb[0].mxu0
      %v748 = vadd.f32 %v576, %v747
      %v749 = vpop.f32.mrb[0].mxu0
      %750 = vmatprep.mubr.f32.mxu0 0.0
      %751 = vmatmul.mubr.f32.gmra.mrb[0].mxu0 %v615
      %v752 = vpop.f32.mrb[0].mxu0
      %v753 = vadd.f32 %v576, %v752
      %v754 = vpop.f32.mrb[0].mxu0
      %755 = vmatprep.mubr.f32.mxu0 0.0
      %756 = vmatmul.mubr.f32.gmra.mrb[0].mxu0 %v618
      %v757 = vpop.f32.mrb[0].mxu0
      %v758 = vadd.f32 %v576, %v757
      %v759 = vpop.f32.mrb[0].mxu0
      %760 = vmatprep.mubr.f32.mxu0 0.0
      %761 = vmatmul.mubr.f32.gmra.mrb[0].mxu0 %v621
      %v762 = vpop.f32.mrb[0].mxu0
      %v763 = vadd.f32 %v576, %v762
      %v764 = vpop.f32.mrb[0].mxu0
      %765 = vmatprep.mubr.f32.mxu0 0.0
      %766 = vmatmul.mubr.f32.gmra.mrb[0].mxu0 %v624
      %v767 = vpop.f32.mrb[0].mxu0
      %v768 = vadd.f32 %v576, %v767
      %v769 = vpop.f32.mrb[0].mxu0
      %770 = vdwg.mxu0
      %v771 = vld [vmem:[%s506] sm:$0xff]
      %v772 = vld [vmem:[%s506 + $0x8] sm:$0xff]
      %v773 = vld [vmem:[%s514] sm:$0xff]
      %776 = vrot.lane.b32.xlu0 %v771, 96
      %v777 = vpop.permute.xlu0 %776
      %778 = vrot.lane.b32.xlu0 %v772, 96
      %v779 = vpop.permute.xlu0 %778
      %v782 = vadd.f32 %v693, %v777
      %v783 = vadd.f32 %v698, %v779
      %v784 = vadd.f32 %v703, %v777
      %v785 = vadd.f32 %v708, %v779
      %v786 = vadd.f32 %v713, %v777
      %v787 = vadd.f32 %v718, %v779
      %v788 = vadd.f32 %v723, %v777
      %v789 = vadd.f32 %v728, %v779
      %v790 = vadd.f32 %v733, %v777
      %v791 = vadd.f32 %v738, %v779
      %v792 = vadd.f32 %v743, %v777
      %v793 = vadd.f32 %v748, %v779
      %v794 = vadd.f32 %v753, %v777
      %v795 = vadd.f32 %v758, %v779
      %v796 = vadd.f32 %v763, %v777
      %v797 = vadd.f32 %v768, %v779
      %v799 = vcombine.high %v773, %v773
      %v801 = vunpack.c.l.s4 1966171168
      %v802 = vunpack.c.0.s8 %v801
      %v803 = vlaneseq
      %v804 = vshrl.u32 %v803, 7
      %v805 = vsub.s32 %v802, %v804
      %v806 = vrot.slane %v773, %v805
      %v808 = vunpack.c.l.s4 1966171168
      %v809 = vunpack.c.0.s8 %v808
      %v810 = vlaneseq
      %v811 = vshrl.u32 %v810, 7
      %v812 = vsub.s32 %v809, %v811
      %v813 = vrot.slane %v799, %v812
      %v814 = vcombine.high %v806, %v806
      %v815 = vcombine.high %v813, %v813
      %v817 = vunpack.c.l.s4 1966171168
      %v818 = vunpack.c.0.s8 %v817
      %v819 = vlaneseq
      %v820 = vshrl.u32 %v819, 7
      %v821 = vsub.s32 %v818, %v820
      %v822 = vrot.slane %v806, %v821
      %v824 = vunpack.c.l.s4 1966171168
      %v825 = vunpack.c.0.s8 %v824
      %v826 = vlaneseq
      %v827 = vshrl.u32 %v826, 7
      %v828 = vsub.s32 %v825, %v827
      %v829 = vrot.slane %v813, %v828
      %v831 = vunpack.c.l.s4 1966171168
      %v832 = vunpack.c.0.s8 %v831
      %v833 = vlaneseq
      %v834 = vshrl.u32 %v833, 7
      %v835 = vsub.s32 %v832, %v834
      %v836 = vrot.slane %v814, %v835
      %v838 = vunpack.c.l.s4 1966171168
      %v839 = vunpack.c.0.s8 %v838
      %v840 = vlaneseq
      %v841 = vshrl.u32 %v840, 7
      %v842 = vsub.s32 %v839, %v841
      %v843 = vrot.slane %v815, %v842
      %v844 = vcombine.high %v822, %v822
      %v845 = vcombine.high %v829, %v829
      %v846 = vcombine.high %v836, %v836
      %v847 = vcombine.high %v843, %v843
      %v848 = vlaneseq
      %v849 = vshrl.u32 %v848, 7
      %v850 = vsub.s32 0, %v849
      %v851 = vrot.slane %v822, %v850
      %v852 = vlaneseq
      %v853 = vshrl.u32 %v852, 7
      %v854 = vsub.s32 0, %v853
      %v855 = vrot.slane %v836, %v854
      %v856 = vlaneseq
      %v857 = vshrl.u32 %v856, 7
      %v858 = vsub.s32 0, %v857
      %v859 = vrot.slane %v844, %v858
      %v860 = vlaneseq
      %v861 = vshrl.u32 %v860, 7
      %v862 = vsub.s32 0, %v861
      %v863 = vrot.slane %v846, %v862
      %v864 = vlaneseq
      %v865 = vshrl.u32 %v864, 7
      %v866 = vsub.s32 0, %v865
      %v867 = vrot.slane %v829, %v866
      %v868 = vlaneseq
      %v869 = vshrl.u32 %v868, 7
      %v870 = vsub.s32 0, %v869
      %v871 = vrot.slane %v843, %v870
      %v872 = vlaneseq
      %v873 = vshrl.u32 %v872, 7
      %v874 = vsub.s32 0, %v873
      %v875 = vrot.slane %v845, %v874
      %v876 = vlaneseq
      %v877 = vshrl.u32 %v876, 7
      %v878 = vsub.s32 0, %v877
      %v879 = vrot.slane %v847, %v878
      %880 = vrot.lane.b32.xlu0 %v851, 96
      %v881 = vpop.permute.xlu0 %880
      %882 = vrot.lane.b32.xlu0 %v855, 96
      %v883 = vpop.permute.xlu0 %882
      %884 = vrot.lane.b32.xlu0 %v859, 96
      %v885 = vpop.permute.xlu0 %884
      %886 = vrot.lane.b32.xlu0 %v863, 96
      %v887 = vpop.permute.xlu0 %886
      %888 = vrot.lane.b32.xlu0 %v867, 96
      %v889 = vpop.permute.xlu0 %888
      %890 = vrot.lane.b32.xlu0 %v871, 96
      %v891 = vpop.permute.xlu0 %890
      %892 = vrot.lane.b32.xlu0 %v875, 96
      %v893 = vpop.permute.xlu0 %892
      %894 = vrot.lane.b32.xlu0 %v879, 96
      %v895 = vpop.permute.xlu0 %894
      %v904 = vadd.f32 %v782, %v881
      %v905 = vadd.f32 %v783, %v881
      %v906 = vadd.f32 %v784, %v883
      %v907 = vadd.f32 %v785, %v883
      %v908 = vadd.f32 %v786, %v885
      %v909 = vadd.f32 %v787, %v885
      %v910 = vadd.f32 %v788, %v887
      %v911 = vadd.f32 %v789, %v887
      %v912 = vadd.f32 %v790, %v889
      %v913 = vadd.f32 %v791, %v889
      %v914 = vadd.f32 %v792, %v891
      %v915 = vadd.f32 %v793, %v891
      %v916 = vadd.f32 %v794, %v893
      %v917 = vadd.f32 %v795, %v893
      %v918 = vadd.f32 %v796, %v895
      %v919 = vadd.f32 %v797, %v895
      %v920 = vld [vmem:[%s8] sm:$0x1]
      %v921 = vlaneseq
      %v922 = vshrl.u32 %v921, 7
      %v923 = vsub.s32 0, %v922
      %v924 = vrot.slane %v920, %v923
      %v925 = vmul.f32 %v904, %v924
      %v926 = vmul.f32 %v905, %v924
      %v927 = vmul.f32 %v906, %v924
      %v928 = vmul.f32 %v907, %v924
      %v929 = vmul.f32 %v908, %v924
      %v930 = vmul.f32 %v909, %v924
      %v931 = vmul.f32 %v910, %v924
      %v932 = vmul.f32 %v911, %v924
      %v933 = vmul.f32 %v912, %v924
      %v934 = vmul.f32 %v913, %v924
      %v935 = vmul.f32 %v914, %v924
      %v936 = vmul.f32 %v915, %v924
      %v937 = vmul.f32 %v916, %v924
      %v938 = vmul.f32 %v917, %v924
      %v939 = vmul.f32 %v918, %v924
      %v940 = vmul.f32 %v919, %v924
      %v941 = vld [vmem:[%s8 + $0x1] sm:$0x1]
      %v942 = vlaneseq
      %v943 = vshrl.u32 %v942, 7
      %v944 = vsub.s32 0, %v943
      %v945 = vrot.slane %v941, %v944
      %v946 = vadd.f32 %v925, %v945
      %v947 = vadd.f32 %v926, %v945
      %v948 = vadd.f32 %v927, %v945
      %v949 = vadd.f32 %v928, %v945
      %v950 = vadd.f32 %v929, %v945
      %v951 = vadd.f32 %v930, %v945
      %v952 = vadd.f32 %v931, %v945
      %v953 = vadd.f32 %v932, %v945
      %v954 = vadd.f32 %v933, %v945
      %v955 = vadd.f32 %v934, %v945
      %v956 = vadd.f32 %v935, %v945
      %v957 = vadd.f32 %v936, %v945
      %v958 = vadd.f32 %v937, %v945
      %v959 = vadd.f32 %v938, %v945
      %v960 = vadd.f32 %v939, %v945
      %v961 = vadd.f32 %v940, %v945
      %v962 = vmax.f32 %v946, 0.0
      %v963 = vmax.f32 %v947, 0.0
      %v964 = vmax.f32 %v948, 0.0
      %v965 = vmax.f32 %v949, 0.0
      %v966 = vmax.f32 %v950, 0.0
      %v967 = vmax.f32 %v951, 0.0
      %v968 = vmax.f32 %v952, 0.0
      %v969 = vmax.f32 %v953, 0.0
      %v970 = vmax.f32 %v954, 0.0
      %v971 = vmax.f32 %v955, 0.0
      %v972 = vmax.f32 %v956, 0.0
      %v973 = vmax.f32 %v957, 0.0
      %v974 = vmax.f32 %v958, 0.0
      %v975 = vmax.f32 %v959, 0.0
      %v976 = vmax.f32 %v960, 0.0
      %v977 = vmax.f32 %v961, 0.0
      %v978 = vadd.f32 %v551, %v962
      %v979 = vadd.f32 %v552, %v963
      %v980 = vadd.f32 %v553, %v964
      %v981 = vadd.f32 %v554, %v965
      %v982 = vadd.f32 %v555, %v966
      %v983 = vadd.f32 %v556, %v967
      %v984 = vadd.f32 %v557, %v968
      %v985 = vadd.f32 %v558, %v969
      %v986 = vadd.f32 %v559, %v970
      %v987 = vadd.f32 %v560, %v971
      %v988 = vadd.f32 %v561, %v972
      %v989 = vadd.f32 %v562, %v973
      %v990 = vadd.f32 %v563, %v974
      %v991 = vadd.f32 %v564, %v975
      %v992 = vadd.f32 %v565, %v976
      %v993 = vadd.f32 %v566, %v977
      %994 = vst.msk [vmem:[%s531] sm:$0xff] %vm549, %v978
      %995 = vst.msk [vmem:[%s531 + $0x8] sm:$0xff] %vm549, %v979
      %996 = vst.msk [vmem:[%s531 + $0x10] sm:$0xff] %vm549, %v980
      %997 = vst.msk [vmem:[%s531 + $0x18] sm:$0xff] %vm549, %v981
      %998 = vst.msk [vmem:[%s531 + $0x20] sm:$0xff] %vm549, %v982
      %999 = vst.msk [vmem:[%s531 + $0x28] sm:$0xff] %vm549, %v983
      %1000 = vst.msk [vmem:[%s531 + $0x30] sm:$0xff] %vm549, %v984
      %1001 = vst.msk [vmem:[%s531 + $0x38] sm:$0xff] %vm549, %v985
      %1002 = vst.msk [vmem:[%s531 + $0x40] sm:$0xff] %vm549, %v986
      %1003 = vst.msk [vmem:[%s531 + $0x48] sm:$0xff] %vm549, %v987
      %1004 = vst.msk [vmem:[%s531 + $0x50] sm:$0xff] %vm549, %v988
      %1005 = vst.msk [vmem:[%s531 + $0x58] sm:$0xff] %vm549, %v989
      %1006 = vst.msk [vmem:[%s531 + $0x60] sm:$0xff] %vm549, %v990
      %1007 = vst.msk [vmem:[%s531 + $0x68] sm:$0xff] %vm549, %v991
      %1008 = vst.msk [vmem:[%s531 + $0x70] sm:$0xff] %vm549, %v992
      %1009 = vst.msk [vmem:[%s531 + $0x78] sm:$0xff] %vm549, %v993
      %p1010 = scmp.lt.s32.totalorder %s26, 1
      %s1011 = scalar_select %p1010, %s26, 1
      %p1012 = scmp.lt.s32.totalorder %s27, 1
      %s1013 = scalar_select %p1012, %s27, 1
      %s1014 = smul.addr %s1011, 2
      %s1015 = sadd.s32 %s1013, %s1014
      %s1016 = smul.addr %s1015, 8
      %s1017 = scalar_lea.vmem %s9, %s1016
      %s1018 = smul.u32 16, %s27
      %p1019 = scmp.lt.s32.totalorder %s26, 1
      %s1020 = scalar_select %p1019, %s26, 1
      %p1021 = scmp.lt.s32.totalorder %s1018, 31
      %s1022 = scalar_select %p1021, %s1018, 31
      %s1023 = smul.addr %s1020, 32
      %s1024 = sadd.s32 %s1022, %s1023
      %s1025 = smul.addr %s1024, 8
      %s1026 = scalar_lea.vmem %s10, %s1025
      // Predicated region
      $region57: #{gnn_layer_forward.5} parent=55 // pred_check
        %p1027 = pneg %p276
      $region58: #{gnn_layer_forward.5} parent=55 // pred_check_branch
        %1029 = sbr.rel (%p1027) target = $region60
      $region59: #{gnn_layer_forward.5} parent=55 // pred_region
        _
      $region60: #{gnn_layer_forward.5} parent=55 // pred_fallthru
        _
      // Predicated region
      $region61: #{gnn_layer_forward.5} parent=55 // pred_check
        %p1030 = pneg %p304
      $region62: #{gnn_layer_forward.5} parent=55 // pred_check_branch
        %1032 = sbr.rel (%p1030) target = $region64
      $region63: #{gnn_layer_forward.5} parent=55 // pred_region
        %s1033 = smul.u32 16, %s27
      $region64: #{gnn_layer_forward.5} parent=55 // pred_fallthru
        _
    $region56: #{gnn_layer_forward.5} parent=5 // pred_fallthru
      _
    %p1034 = scmp.le.s32.totalorder 2, %s17
    // Predicated region
    $region65: #{gnn_layer_forward.5} parent=5 // pred_check
      %p1035 = pneg %p1034
    $region66: #{gnn_layer_forward.5} parent=5 // pred_check_branch
      %1037 = sbr.rel (%p1035) target = $region68
    $region67: #{gnn_layer_forward.5} parent=5 // pred_region
      %s1038 = ssub.s32 %s17, 2
      // Predicated region
      $region69: #{gnn_layer_forward.5} parent=67 // pred_check
        %p1039 = pneg %p282
      $region70: #{gnn_layer_forward.5} parent=67 // pred_check_branch
        %1041 = sbr.rel (%p1039) target = $region72
      $region71: #{gnn_layer_forward.5} parent=67 // pred_region
        %p1042 = scmp.lt.s32.totalorder %s28, 1
        %s1043 = scalar_select %p1042, %s28, 1
        %p1044 = scmp.lt.s32.totalorder %s29, 1
        %s1045 = scalar_select %p1044, %s29, 1
        %s1046 = smul.addr %s1043, 2
        %s1047 = sadd.s32 %s1045, %s1046
        %s1048 = smul.addr %s1047, 8
        %s1049 = scalar_lea.vmem %s9, %s1048
      $region72: #{gnn_layer_forward.5} parent=67 // pred_fallthru
        _
      // Predicated region
      $region73: #{gnn_layer_forward.5} parent=67 // pred_check
        %p1050 = pneg %p310
      $region74: #{gnn_layer_forward.5} parent=67 // pred_check_branch
        %1052 = sbr.rel (%p1050) target = $region76
      $region75: #{gnn_layer_forward.5} parent=67 // pred_region
        %s1053 = smul.u32 16, %s29
        %p1054 = scmp.lt.s32.totalorder %s28, 1
        %s1055 = scalar_select %p1054, %s28, 1
        %p1056 = scmp.lt.s32.totalorder %s1053, 31
        %s1057 = scalar_select %p1056, %s1053, 31
        %s1058 = smul.addr %s1055, 32
        %s1059 = sadd.s32 %s1057, %s1058
        %s1060 = smul.addr %s1059, 8
        %s1061 = scalar_lea.vmem %s10, %s1060
      $region76: #{gnn_layer_forward.5} parent=67 // pred_fallthru
        _
    $region68: #{gnn_layer_forward.5} parent=5 // pred_fallthru
      _
  $region6: #{gnn_layer_forward.5} parent=0 // loop_footer
    %s21 = sadd.s32 1, %s17
  $region7: #{gnn_layer_forward.5} parent=0 // loop_footer_branch
    %16 = sbr.rel target = $region3
  $region8: #{gnn_layer_forward.5} parent=0 // loop_exit
    _

</llo_original>
